<compile_context>
chip_gen: v7x
topology: tpu7x:2x2x1
jax: 0.10.0
libtpu: 0.0.40
codegen_flags: <defaults>
</compile_context>

<pallas_src>
import jax
import jax.numpy as jnp
from jax.experimental import pallas as pl
from jax.experimental.pallas import tpu as pltpu


# ----------------------------------------------------------------------------
# Kernel
# ----------------------------------------------------------------------------
def critic_kernel(x_ref, w1_ref, b1_ref, w2_ref, b2_ref, w3_ref, b3_ref, out_ref):
    x = x_ref[...]                                                  # (bt, F) f32

    # Layer 1: f32 MXU matmul, bias + leaky_relu on the VPU.
    h1 = jnp.dot(x, w1_ref[...], preferred_element_type=jnp.float32) + b1_ref[...]
    h1 = jnp.maximum(h1, 0.1 * h1)                                  # leaky_relu(0.1)

    # Layer 2.
    h2 = jnp.dot(h1, w2_ref[...], preferred_element_type=jnp.float32) + b2_ref[...]
    h2 = jnp.maximum(h2, 0.1 * h2)

    # Layer 3 (output width 1): lane-dense NT contraction w3_row . h2^T -> (1, bt),
    # batch on the lane axis (no XLU reduce / sublane->lane relayout).
    h3 = jax.lax.dot_general(w3_ref[...], h2, (((1,), (1,)), ((), ())),
                             preferred_element_type=jnp.float32)
    h3 = h3 + b3_ref[0, 0]                                          # scalar from SMEM
    out_ref[...] = h3.reshape(out_ref.shape)                        # (1, 1, bt)


# ----------------------------------------------------------------------------
# Helpers
# ----------------------------------------------------------------------------
def _round_up(v, m):
    return (v + m - 1) // m * m


def _num_tensorcores():
    """2 TensorCores per device on v7x-class chips, 1 on v5e/v6e."""
    try:
        kind = jax.devices()[0].device_kind.lower()
    except Exception:
        return 1
    return 2 if "v7" in kind else 1


def _vmem_cap_bytes():
    """Generation-aware VMEM cap with headroom for compiler scratch
    (~56 MiB on v7x's 64 MiB, ~112 MiB on v5e/v6e's 128 MiB)."""
    cap = 64 << 20  # conservative fallback = smallest per-TC VMEM (v7x)
    try:
        cap = int(getattr(pltpu.get_tpu_info(), "vmem_capacity_bytes", cap))
    except Exception:
        pass
    return cap * 7 // 8


def _pick_batch_tile(B, F, Np, num_tc, vmem_cap):
    """Batch tile bounded by the VMEM budget; single grid step on 1-TC chips,
    two balanced tiles on dual-TC chips, otherwise the largest lane-friendly
    divisor whose tile count is a multiple of the TensorCore count."""
    Fp = _round_up(max(F, 1), 128)
    weight_bytes = (F * Np + Np * Np + 3 * 8 * Np) * 4       # single-buffered weights
    avail = max(vmem_cap - weight_bytes - (4 << 20), 4 << 20)
    per_row = 2 * Fp * 4 + 2 * 8 * 4 + 2 * Np * 4            # x/out (x2 bufs) + h1/h2
    cap = min(int(avail // per_row), 4096)
    cap = max(cap - cap % 8, 8)

    if num_tc <= 1:
        if B <= cap:
            return B                       # one grid step: no per-step overhead
    else:
        half = B // 2
        if B % 2 == 0 and 0 < half <= cap and half % 8 == 0:
            return half                    # two equal tiles, one per TensorCore

    # Fallback: largest divisor <= cap, preferring lane-dense multiples of 128,
    # tile count a multiple of num_tc so both cores stay balanced.
    for align in (128, 8):
        t = cap - cap % align
        while t >= align:
            if B % t == 0 and (B // t) % max(num_tc, 1) == 0:
                return t
            t -= align
    return B


def prepare_params(params):
    """One-time parameter prep (outside the per-forward path):
    weights stored as (in, out), hidden width zero-padded to a multiple of 128."""
    F, N = params["w1"].shape
    Np = _round_up(N, 128)
    pad = Np - N

    w1 = jnp.asarray(params["w1"], jnp.float32)
    b1 = jnp.asarray(params["b1"], jnp.float32).reshape(1, N)
    w2 = jnp.asarray(params["w2"], jnp.float32)
    b2 = jnp.asarray(params["b2"], jnp.float32).reshape(1, N)
    w3 = jnp.asarray(params["w3"], jnp.float32).reshape(1, N)   # row vector
    b3 = jnp.asarray(params["b3"], jnp.float32).reshape(1, 1)

    if pad:
        w1 = jnp.pad(w1, ((0, 0), (0, pad)))
        b1 = jnp.pad(b1, ((0, 0), (0, pad)))
        w2 = jnp.pad(w2, ((0, pad), (0, pad)))
        b2 = jnp.pad(b2, ((0, 0), (0, pad)))
        w3 = jnp.pad(w3, ((0, 0), (0, pad)))

    return {"w1": w1, "b1": b1, "w2": w2, "b2": b2, "w3": w3, "b3": b3,
            "input_shape": F, "neurons": N, "padded_neurons": Np}


# ----------------------------------------------------------------------------
# Forward wrapper
# ----------------------------------------------------------------------------
def critic_forward(x, prep, *, batch_tile=None):
    """x: (B, input_shape) f32; prep: output of prepare_params."""
    B, F = x.shape
    assert F == prep["input_shape"]
    Np = prep["padded_neurons"]
    Fp = _round_up(max(F, 1), 128)

    num_tc = _num_tensorcores()
    vmem_cap = _vmem_cap_bytes()
    if batch_tile is None:
        batch_tile = _pick_batch_tile(B, F, Np, num_tc, vmem_cap)
    assert B % batch_tile == 0, "batch must be divisible by batch_tile"
    assert batch_tile == B or batch_tile % 8 == 0, (
        "batch_tile must be a multiple of 8 (sublane) or equal to B")
    num_tiles = B // batch_tile

    xf = jnp.asarray(x, jnp.float32)   # no-op for f32 inputs (no wrapper cast pass)

    def _weight_specs(use_buffered):
        shapes = [(F, Np), (1, Np), (Np, Np), (1, Np), (1, Np)]
        specs = []
        for shp in shapes:
            zero = (0,) * len(shp)
            if use_buffered:
                # Grid-invariant blocks: single-buffered (halves their VMEM).
                specs.append(pl.BlockSpec(shp, lambda i, z=zero: z,
                                          pipeline_mode=pl.Buffered(1)))
            else:
                specs.append(pl.BlockSpec(shp, lambda i, z=zero: z))
        return specs

    def _run(single_buffer_weights):
        use_buffered = single_buffer_weights and hasattr(pl, "Buffered")
        weight_factor = 1 if use_buffered else 2

        # Explicit VMEM budget (tile choice already bounded by vmem_cap above).
        weight_bytes = (F * Np + Np * Np + 3 * 8 * Np) * 4
        io_bytes = 2 * (batch_tile * Fp * 4 + 8 * batch_tile * 4)   # dbl-buf x / out
        act_bytes = 2 * batch_tile * Np * 4                         # h1, h2 (f32)
        needed = weight_factor * weight_bytes + io_bytes + act_bytes + (2 << 20)
        vmem_limit = int(min(max(needed, 16 << 20), vmem_cap))

        return pl.pallas_call(
            critic_kernel,
            out_shape=jax.ShapeDtypeStruct((num_tiles, 1, batch_tile), jnp.float32),
            grid_spec=pltpu.PrefetchScalarGridSpec(
                num_scalar_prefetch=0,
                grid=(num_tiles,),
                in_specs=[
                    # x: tiled over batch.
                    pl.BlockSpec((batch_tile, F), lambda i: (i, 0)),
                    # w1, b1, w2, b2, w3: grid-invariant blocks.
                    *_weight_specs(use_buffered),
                    # b3: scalar via SMEM.
                    pl.BlockSpec(memory_space=pltpu.MemorySpace.SMEM),
                ],
                # Lane-dense output: batch on the lane axis -> unmasked stores.
                out_specs=pl.BlockSpec((1, 1, batch_tile), lambda i: (i, 0, 0)),
            ),
            compiler_params=pltpu.CompilerParams(
                dimension_semantics=("parallel",),
                vmem_limit_bytes=vmem_limit,
            ),
        )(xf, prep["w1"], prep["b1"], prep["w2"], prep["b2"], prep["w3"], prep["b3"])

    try:
        out = _run(True)
    except Exception:
        # pipeline_mode=pl.Buffered(1) unsupported in this jax build:
        # fall back to default (double-buffered) weight blocks.
        out = _run(False)

    # (num_tiles, 1, batch_tile) -> (B, 1), row order preserved.
    return out.reshape(B, 1).astype(x.dtype)


# ----------------------------------------------------------------------------
# Reference / init (PyTorch nn.Linear-style)
# ----------------------------------------------------------------------------
def init_params(key, input_shape, neurons):
    """Uniform +-1/sqrt(fan_in) init; weights stored as (in, out)."""
    k1, k2, k3, k4, k5, k6 = jax.random.split(key, 6)

    def lin(kw, kb, fan_in, fan_out):
        bound = 1.0 / jnp.sqrt(fan_in)
        w = jax.random.uniform(kw, (fan_in, fan_out), jnp.float32, -bound, bound)
        b = jax.random.uniform(kb, (fan_out,), jnp.float32, -bound, bound)
        return w, b

    w1, b1 = lin(k1, k2, input_shape, neurons)
    w2, b2 = lin(k3, k4, neurons, neurons)
    w3, b3 = lin(k5, k6, neurons, 1)
    return {"w1": w1, "b1": b1, "w2": w2, "b2": b2, "w3": w3, "b3": b3}


def _leaky(x, slope=0.1):
    return jnp.where(x >= 0, x, slope * x)


def critic_reference(x, params):
    h1 = _leaky(x @ params["w1"] + params["b1"])
    h2 = _leaky(h1 @ params["w2"] + params["b2"])
    return h2 @ params["w3"] + params["b3"]


if __name__ == "__main__":
    key = jax.random.PRNGKey(0)
    kx, kp = jax.random.split(key)

    batch = 256
    input_shape = 32
    neurons = 64

    x = jax.random.normal(kx, (batch, input_shape), jnp.float32)
    params = init_params(kp, input_shape, neurons)
    prep = prepare_params(params)          # one-time weight prep (not per-call)

    out = critic_forward(x, prep)
    out = jax.block_until_ready(out)

    ref = critic_reference(x, params)
    assert out.shape == (batch, 1)
    assert jnp.allclose(out, ref, atol=2e-2, rtol=2e-2), "mismatch vs JAX reference"

    print("KERNEL_OK")
</pallas_src>

<mosaic_0001>
module attributes {stable_mosaic.version = 11 : i64} {
  func.func @critic_kernel(%arg0: i32, %arg1: memref<256x32xf32, #tpu.memory_space<vmem>>, %arg2: memref<32x128xf32, #tpu.memory_space<vmem>>, %arg3: memref<1x128xf32, #tpu.memory_space<vmem>>, %arg4: memref<128x128xf32, #tpu.memory_space<vmem>>, %arg5: memref<1x128xf32, #tpu.memory_space<vmem>>, %arg6: memref<1x128xf32, #tpu.memory_space<vmem>>, %arg7: memref<1x1xf32, #tpu.memory_space<smem>>, %arg8: memref<1x1x256xf32, #tpu.memory_space<vmem>>) attributes {dimension_semantics = [#tpu.dimension_semantics<parallel>], iteration_bounds = array<i64: 1>, scalar_prefetch = 0 : i64, scratch_operands = 0 : i64, tpu.core_type = #tpu.core_type<tc>, window_params = [{transform_indices = @transform_0, window_bounds = array<i64: 256, 32>}, {pipeline_mode = #tpu.pipeline_mode<synchronous>, transform_indices = @transform_1, window_bounds = array<i64: 32, 128>}, {pipeline_mode = #tpu.pipeline_mode<synchronous>, transform_indices = @transform_2, window_bounds = array<i64: 1, 128>}, {pipeline_mode = #tpu.pipeline_mode<synchronous>, transform_indices = @transform_3, window_bounds = array<i64: 128, 128>}, {pipeline_mode = #tpu.pipeline_mode<synchronous>, transform_indices = @transform_4, window_bounds = array<i64: 1, 128>}, {pipeline_mode = #tpu.pipeline_mode<synchronous>, transform_indices = @transform_5, window_bounds = array<i64: 1, 128>}, {transform_indices = @transform_6, window_bounds = array<i64: 1, 1>}, {transform_indices = @transform_7, window_bounds = array<i64: 1, 1, 256>}]} {
    %c0 = arith.constant 0 : index
    %c0_0 = arith.constant 0 : index
    %0 = vector.load %arg1[%c0, %c0_0] : memref<256x32xf32, #tpu.memory_space<vmem>>, vector<256x32xf32>
    %c0_1 = arith.constant 0 : index
    %c0_2 = arith.constant 0 : index
    %1 = vector.load %arg2[%c0_1, %c0_2] : memref<32x128xf32, #tpu.memory_space<vmem>>, vector<32x128xf32>
    %cst = arith.constant dense<0.000000e+00> : vector<256x128xf32>
    %2 = tpu.matmul %0, %1, %cst {dimension_numbers = #tpu.dot_dimension_numbers<[1], [0], [0], [1], [0, 0, 1, 1], [], []>} : vector<256x32xf32>, vector<32x128xf32>, vector<256x128xf32> -> vector<256x128xf32>
    %c0_3 = arith.constant 0 : index
    %c0_4 = arith.constant 0 : index
    %3 = vector.load %arg3[%c0_3, %c0_4] : memref<1x128xf32, #tpu.memory_space<vmem>>, vector<1x128xf32>
    %4 = vector.broadcast %3 : vector<1x128xf32> to vector<256x128xf32>
    %5 = arith.addf %2, %4 : vector<256x128xf32>
    %cst_5 = arith.constant 1.000000e-01 : f32
    %6 = vector.broadcast %cst_5 : f32 to vector<256x128xf32>
    %7 = arith.mulf %6, %5 : vector<256x128xf32>
    %8 = arith.maximumf %5, %7 : vector<256x128xf32>
    %c0_6 = arith.constant 0 : index
    %c0_7 = arith.constant 0 : index
    %9 = vector.load %arg4[%c0_6, %c0_7] : memref<128x128xf32, #tpu.memory_space<vmem>>, vector<128x128xf32>
    %cst_8 = arith.constant dense<0.000000e+00> : vector<256x128xf32>
    %10 = tpu.matmul %8, %9, %cst_8 {dimension_numbers = #tpu.dot_dimension_numbers<[1], [0], [0], [1], [0, 0, 1, 1], [], []>} : vector<256x128xf32>, vector<128x128xf32>, vector<256x128xf32> -> vector<256x128xf32>
    %c0_9 = arith.constant 0 : index
    %c0_10 = arith.constant 0 : index
    %11 = vector.load %arg5[%c0_9, %c0_10] : memref<1x128xf32, #tpu.memory_space<vmem>>, vector<1x128xf32>
    %12 = vector.broadcast %11 : vector<1x128xf32> to vector<256x128xf32>
    %13 = arith.addf %10, %12 : vector<256x128xf32>
    %cst_11 = arith.constant 1.000000e-01 : f32
    %14 = vector.broadcast %cst_11 : f32 to vector<256x128xf32>
    %15 = arith.mulf %14, %13 : vector<256x128xf32>
    %16 = arith.maximumf %13, %15 : vector<256x128xf32>
    %c0_12 = arith.constant 0 : index
    %c0_13 = arith.constant 0 : index
    %17 = vector.load %arg6[%c0_12, %c0_13] : memref<1x128xf32, #tpu.memory_space<vmem>>, vector<1x128xf32>
    %cst_14 = arith.constant dense<0.000000e+00> : vector<1x256xf32>
    %18 = tpu.matmul %17, %16, %cst_14 {dimension_numbers = #tpu.dot_dimension_numbers<[1], [1], [0], [0], [0, 0, 1, 0], [], []>} : vector<1x128xf32>, vector<256x128xf32>, vector<1x256xf32> -> vector<1x256xf32>
    %c0_15 = arith.constant 0 : index
    %c0_16 = arith.constant 0 : index
    %19 = memref.load %arg7[%c0_15, %c0_16] : memref<1x1xf32, #tpu.memory_space<smem>>
    %20 = vector.broadcast %19 : f32 to vector<1x256xf32>
    %21 = arith.addf %18, %20 : vector<1x256xf32>
    %22 = vector.shape_cast %21 : vector<1x256xf32> to vector<1x1x256xf32>
    %c0_17 = arith.constant 0 : index
    %c0_18 = arith.constant 0 : index
    %c0_19 = arith.constant 0 : index
    %23 = vector.load %arg8[%c0_17, %c0_18, %c0_19] : memref<1x1x256xf32, #tpu.memory_space<vmem>>, vector<1x1x256xf32>
    tpu.vector_store %arg8[%c0_17, %c0_18, %c0_19], %22 {strides = array<i32>} : memref<1x1x256xf32, #tpu.memory_space<vmem>>, vector<1x1x256xf32>,
    return
  }
  func.func @transform_0(%arg0: i32) -> (i32, i32) {
    %c0_i32 = arith.constant 0 : i32
    %c0_i32_0 = arith.constant 0 : i32
    return %arg0, %c0_i32 : i32, i32
  }
  func.func @transform_1(%arg0: i32) -> (i32, i32) {
    %c0_i32 = arith.constant 0 : i32
    %c0_i32_0 = arith.constant 0 : i32
    %c0_i32_1 = arith.constant 0 : i32
    return %c0_i32, %c0_i32_0 : i32, i32
  }
  func.func @transform_2(%arg0: i32) -> (i32, i32) {
    %c0_i32 = arith.constant 0 : i32
    %c0_i32_0 = arith.constant 0 : i32
    %c0_i32_1 = arith.constant 0 : i32
    return %c0_i32, %c0_i32_0 : i32, i32
  }
  func.func @transform_3(%arg0: i32) -> (i32, i32) {
    %c0_i32 = arith.constant 0 : i32
    %c0_i32_0 = arith.constant 0 : i32
    %c0_i32_1 = arith.constant 0 : i32
    return %c0_i32, %c0_i32_0 : i32, i32
  }
  func.func @transform_4(%arg0: i32) -> (i32, i32) {
    %c0_i32 = arith.constant 0 : i32
    %c0_i32_0 = arith.constant 0 : i32
    %c0_i32_1 = arith.constant 0 : i32
    return %c0_i32, %c0_i32_0 : i32, i32
  }
  func.func @transform_5(%arg0: i32) -> (i32, i32) {
    %c0_i32 = arith.constant 0 : i32
    %c0_i32_0 = arith.constant 0 : i32
    %c0_i32_1 = arith.constant 0 : i32
    return %c0_i32, %c0_i32_0 : i32, i32
  }
  func.func @transform_6(%arg0: i32) -> (i32, i32) {
    %c0_i32 = arith.constant 0 : i32
    %c0_i32_0 = arith.constant 0 : i32
    %c0_i32_1 = arith.constant 0 : i32
    return %c0_i32, %c0_i32_0 : i32, i32
  }
  func.func @transform_7(%arg0: i32) -> (i32, i32, i32) {
    %c0_i32 = arith.constant 0 : i32
    %c0_i32_0 = arith.constant 0 : i32
    %c0_i32_1 = arith.constant 0 : i32
    return %arg0, %c0_i32, %c0_i32_0 : i32, i32, i32
  }
}

module attributes {stable_mosaic.version = 11 : i64} {
  func.func @critic_kernel(%arg0: i32, %arg1: memref<256x32xf32, #tpu.memory_space<vmem>>, %arg2: memref<32x128xf32, #tpu.memory_space<vmem>>, %arg3: memref<1x128xf32, #tpu.memory_space<vmem>>, %arg4: memref<128x128xf32, #tpu.memory_space<vmem>>, %arg5: memref<1x128xf32, #tpu.memory_space<vmem>>, %arg6: memref<1x128xf32, #tpu.memory_space<vmem>>, %arg7: memref<1x1xf32, #tpu.memory_space<smem>>, %arg8: memref<1x1x256xf32, #tpu.memory_space<vmem>>) attributes {dimension_semantics = [#tpu.dimension_semantics<parallel>], iteration_bounds = array<i64: 1>, scalar_prefetch = 0 : i64, scratch_operands = 0 : i64, tpu.core_type = #tpu.core_type<tc>, window_params = [{transform_indices = @transform_0, window_bounds = array<i64: 256, 32>}, {pipeline_mode = #tpu.pipeline_mode<synchronous>, transform_indices = @transform_1, window_bounds = array<i64: 32, 128>}, {pipeline_mode = #tpu.pipeline_mode<synchronous>, transform_indices = @transform_2, window_bounds = array<i64: 1, 128>}, {pipeline_mode = #tpu.pipeline_mode<synchronous>, transform_indices = @transform_3, window_bounds = array<i64: 128, 128>}, {pipeline_mode = #tpu.pipeline_mode<synchronous>, transform_indices = @transform_4, window_bounds = array<i64: 1, 128>}, {pipeline_mode = #tpu.pipeline_mode<synchronous>, transform_indices = @transform_5, window_bounds = array<i64: 1, 128>}, {transform_indices = @transform_6, window_bounds = array<i64: 1, 1>}, {transform_indices = @transform_7, window_bounds = array<i64: 1, 1, 256>}]} {
    %c0 = arith.constant 0 : index
    %c0_0 = arith.constant 0 : index
    %0 = vector.load %arg1[%c0, %c0_0] : memref<256x32xf32, #tpu.memory_space<vmem>>, vector<256x32xf32>
    %c0_1 = arith.constant 0 : index
    %c0_2 = arith.constant 0 : index
    %1 = vector.load %arg2[%c0_1, %c0_2] : memref<32x128xf32, #tpu.memory_space<vmem>>, vector<32x128xf32>
    %cst = arith.constant dense<0.000000e+00> : vector<256x128xf32>
    %2 = tpu.matmul %0, %1, %cst {dimension_numbers = #tpu.dot_dimension_numbers<[1], [0], [0], [1], [0, 0, 1, 1], [], []>} : vector<256x32xf32>, vector<32x128xf32>, vector<256x128xf32> -> vector<256x128xf32>
    %c0_3 = arith.constant 0 : index
    %c0_4 = arith.constant 0 : index
    %3 = vector.load %arg3[%c0_3, %c0_4] : memref<1x128xf32, #tpu.memory_space<vmem>>, vector<1x128xf32>
    %4 = vector.broadcast %3 : vector<1x128xf32> to vector<256x128xf32>
    %5 = arith.addf %2, %4 : vector<256x128xf32>
    %cst_5 = arith.constant 1.000000e-01 : f32
    %6 = vector.broadcast %cst_5 : f32 to vector<256x128xf32>
    %7 = arith.mulf %6, %5 : vector<256x128xf32>
    %8 = arith.maximumf %5, %7 : vector<256x128xf32>
    %c0_6 = arith.constant 0 : index
    %c0_7 = arith.constant 0 : index
    %9 = vector.load %arg4[%c0_6, %c0_7] : memref<128x128xf32, #tpu.memory_space<vmem>>, vector<128x128xf32>
    %cst_8 = arith.constant dense<0.000000e+00> : vector<256x128xf32>
    %10 = tpu.matmul %8, %9, %cst_8 {dimension_numbers = #tpu.dot_dimension_numbers<[1], [0], [0], [1], [0, 0, 1, 1], [], []>} : vector<256x128xf32>, vector<128x128xf32>, vector<256x128xf32> -> vector<256x128xf32>
    %c0_9 = arith.constant 0 : index
    %c0_10 = arith.constant 0 : index
    %11 = vector.load %arg5[%c0_9, %c0_10] : memref<1x128xf32, #tpu.memory_space<vmem>>, vector<1x128xf32>
    %12 = vector.broadcast %11 : vector<1x128xf32> to vector<256x128xf32>
    %13 = arith.addf %10, %12 : vector<256x128xf32>
    %cst_11 = arith.constant 1.000000e-01 : f32
    %14 = vector.broadcast %cst_11 : f32 to vector<256x128xf32>
    %15 = arith.mulf %14, %13 : vector<256x128xf32>
    %16 = arith.maximumf %13, %15 : vector<256x128xf32>
    %c0_12 = arith.constant 0 : index
    %c0_13 = arith.constant 0 : index
    %17 = vector.load %arg6[%c0_12, %c0_13] : memref<1x128xf32, #tpu.memory_space<vmem>>, vector<1x128xf32>
    %cst_14 = arith.constant dense<0.000000e+00> : vector<1x256xf32>
    %18 = tpu.matmul %17, %16, %cst_14 {dimension_numbers = #tpu.dot_dimension_numbers<[1], [1], [0], [0], [0, 0, 1, 0], [], []>} : vector<1x128xf32>, vector<256x128xf32>, vector<1x256xf32> -> vector<1x256xf32>
    %c0_15 = arith.constant 0 : index
    %c0_16 = arith.constant 0 : index
    %19 = memref.load %arg7[%c0_15, %c0_16] : memref<1x1xf32, #tpu.memory_space<smem>>
    %20 = vector.broadcast %19 : f32 to vector<1x256xf32>
    %21 = arith.addf %18, %20 : vector<1x256xf32>
    %22 = vector.shape_cast %21 : vector<1x256xf32> to vector<1x1x256xf32>
    %c0_17 = arith.constant 0 : index
    %c0_18 = arith.constant 0 : index
    %c0_19 = arith.constant 0 : index
    %23 = vector.load %arg8[%c0_17, %c0_18, %c0_19] : memref<1x1x256xf32, #tpu.memory_space<vmem>>, vector<1x1x256xf32>
    tpu.vector_store %arg8[%c0_17, %c0_18, %c0_19], %22 {strides = array<i32>} : memref<1x1x256xf32, #tpu.memory_space<vmem>>, vector<1x1x256xf32>,
    return
  }
  func.func @transform_0(%arg0: i32) -> (i32, i32) {
    %c0_i32 = arith.constant 0 : i32
    %c0_i32_0 = arith.constant 0 : i32
    return %arg0, %c0_i32 : i32, i32
  }
  func.func @transform_1(%arg0: i32) -> (i32, i32) {
    %c0_i32 = arith.constant 0 : i32
    %c0_i32_0 = arith.constant 0 : i32
    %c0_i32_1 = arith.constant 0 : i32
    return %c0_i32, %c0_i32_0 : i32, i32
  }
  func.func @transform_2(%arg0: i32) -> (i32, i32) {
    %c0_i32 = arith.constant 0 : i32
    %c0_i32_0 = arith.constant 0 : i32
    %c0_i32_1 = arith.constant 0 : i32
    return %c0_i32, %c0_i32_0 : i32, i32
  }
  func.func @transform_3(%arg0: i32) -> (i32, i32) {
    %c0_i32 = arith.constant 0 : i32
    %c0_i32_0 = arith.constant 0 : i32
    %c0_i32_1 = arith.constant 0 : i32
    return %c0_i32, %c0_i32_0 : i32, i32
  }
  func.func @transform_4(%arg0: i32) -> (i32, i32) {
    %c0_i32 = arith.constant 0 : i32
    %c0_i32_0 = arith.constant 0 : i32
    %c0_i32_1 = arith.constant 0 : i32
    return %c0_i32, %c0_i32_0 : i32, i32
  }
  func.func @transform_5(%arg0: i32) -> (i32, i32) {
    %c0_i32 = arith.constant 0 : i32
    %c0_i32_0 = arith.constant 0 : i32
    %c0_i32_1 = arith.constant 0 : i32
    return %c0_i32, %c0_i32_0 : i32, i32
  }
  func.func @transform_6(%arg0: i32) -> (i32, i32) {
    %c0_i32 = arith.constant 0 : i32
    %c0_i32_0 = arith.constant 0 : i32
    %c0_i32_1 = arith.constant 0 : i32
    return %c0_i32, %c0_i32_0 : i32, i32
  }
  func.func @transform_7(%arg0: i32) -> (i32, i32, i32) {
    %c0_i32 = arith.constant 0 : i32
    %c0_i32_0 = arith.constant 0 : i32
    %c0_i32_1 = arith.constant 0 : i32
    return %arg0, %c0_i32, %c0_i32_0 : i32, i32, i32
  }
}

</mosaic_0001>

<llo_original>
// kernel: tpu_custom_call.1
$region0: #{tpu_custom_call.1}
  #allocation0 [shape = 'u32[]', space=smem, size = 0x4, offset = 0x4, fixed_abs, tag = 'smem constant byte address 0x4 - core index']
  #allocation1 [shape = 'u32[144,128]{1,0:T(1,128)}', space=vmem, size = 0x12000, scoped, tag = 'internal scratch']
  #allocation2 [shape = 'f32[1,1]{1,0:T(1,128)S(6)}', space=smem, size = 0x200, scoped, tag = 'scoped memory for tpu_custom_call.1']
  %s0 = inlined_call_operand.vmem [shape: f32[256,32], index: 0, kind: input, shape index: {}]
  %s1 = inlined_call_operand.vmem [shape: f32[32,128], index: 1, kind: input, shape index: {}]
  %s2 = inlined_call_operand.vmem [shape: f32[1,128], index: 2, kind: input, shape index: {}]
  %s3 = inlined_call_operand.vmem [shape: f32[128,128], index: 3, kind: input, shape index: {}]
  %s4 = inlined_call_operand.vmem [shape: f32[1,128], index: 4, kind: input, shape index: {}]
  %s5 = inlined_call_operand.vmem [shape: f32[1,128], index: 5, kind: input, shape index: {}]
  %s6 = inlined_call_operand.<no memory space> [shape: f32[1,1], index: 6, kind: input, shape index: {}]
  %s7 = inlined_call_operand.hbm [shape: f32[1,1,256], index: 7, kind: output, shape index: {}]
  %s8 = sld [smem:[#allocation0]]
  $region38: #{tpu_custom_call.1} parent=0
    _
  %s10 = ssub.s32 1, %s8
  %s11 = scalar_select 0, %s10, %s8
  %12 = sst [smem:[#allocation2]] %s6
  $region1: #{tpu_custom_call.1} parent=0
    #allocation3 [shape = 'u8[1024]{0}', space=vmem, size = 0x400, scoped, tag = 'output window, operand 0, single buffered']
    #allocation4 [shape = 's32[1]{0}', space=sflag, size = 0x4, scoped, tag = 'scoped memory for tpu_custom_call.1']
    %13 = vsyncpa [#allocation4], 0
    // Predicated region
    $region2: #{tpu_custom_call.1} parent=1 // pred_check
      _
    $region3: #{tpu_custom_call.1} parent=1 // pred_check_branch
      %15 = sbr.rel (0) target = $region5
    $region4: #{tpu_custom_call.1} parent=1 // pred_region
      _
    $region5: #{tpu_custom_call.1} parent=1 // pred_fallthru
      _
    // Predicated region
    $region6: #{tpu_custom_call.1} parent=1 // pred_check
      _
    $region7: #{tpu_custom_call.1} parent=1 // pred_check_branch
      %17 = sbr.rel (0) target = $region9
    $region8: #{tpu_custom_call.1} parent=1 // pred_region
      _
    $region9: #{tpu_custom_call.1} parent=1 // pred_fallthru
      _
    // Predicated region
    $region10: #{tpu_custom_call.1} parent=1 // pred_check
      _
    $region11: #{tpu_custom_call.1} parent=1 // pred_check_branch
      %19 = sbr.rel (0) target = $region13
    $region12: #{tpu_custom_call.1} parent=1 // pred_region
      _
    $region13: #{tpu_custom_call.1} parent=1 // pred_fallthru
      _
    // Predicated region
    $region14: #{tpu_custom_call.1} parent=1 // pred_check
      _
    $region15: #{tpu_custom_call.1} parent=1 // pred_check_branch
      %21 = sbr.rel (0) target = $region17
    $region16: #{tpu_custom_call.1} parent=1 // pred_region
      _
    $region17: #{tpu_custom_call.1} parent=1 // pred_fallthru
      _
    // Predicated region
    $region18: #{tpu_custom_call.1} parent=1 // pred_check
      _
    $region19: #{tpu_custom_call.1} parent=1 // pred_check_branch
      %23 = sbr.rel (0) target = $region21
    $region20: #{tpu_custom_call.1} parent=1 // pred_region
      _
    $region21: #{tpu_custom_call.1} parent=1 // pred_fallthru
      _
    // Predicated region
    $region22: #{tpu_custom_call.1} parent=1 // pred_check
      _
    $region23: #{tpu_custom_call.1} parent=1 // pred_check_branch
      %25 = sbr.rel (0) target = $region25
    $region24: #{tpu_custom_call.1} parent=1 // pred_region
      _
    $region25: #{tpu_custom_call.1} parent=1 // pred_fallthru
      _
    // Predicated region
    $region26: #{tpu_custom_call.1} parent=1 // pred_check
      _
    $region27: #{tpu_custom_call.1} parent=1 // pred_check_branch
      %27 = sbr.rel (0) target = $region29
    $region28: #{tpu_custom_call.1} parent=1 // pred_region
      _
    $region29: #{tpu_custom_call.1} parent=1 // pred_fallthru
      _
    %v28 = vld [vmem:[%s0] sm:$0xff]
    %v29 = vld [vmem:[%s0 + $0x8] sm:$0xff]
    %v30 = vld [vmem:[%s0 + $0x10] sm:$0xff]
    %v31 = vld [vmem:[%s0 + $0x18] sm:$0xff]
    %v32 = vld [vmem:[%s0 + $0x20] sm:$0xff]
    %v33 = vld [vmem:[%s0 + $0x28] sm:$0xff]
    %v34 = vld [vmem:[%s0 + $0x30] sm:$0xff]
    %v35 = vld [vmem:[%s0 + $0x38] sm:$0xff]
    %v36 = vld [vmem:[%s0 + $0x40] sm:$0xff]
    %v37 = vld [vmem:[%s0 + $0x48] sm:$0xff]
    %v38 = vld [vmem:[%s0 + $0x50] sm:$0xff]
    %v39 = vld [vmem:[%s0 + $0x58] sm:$0xff]
    %v40 = vld [vmem:[%s0 + $0x60] sm:$0xff]
    %v41 = vld [vmem:[%s0 + $0x68] sm:$0xff]
    %v42 = vld [vmem:[%s0 + $0x70] sm:$0xff]
    %v43 = vld [vmem:[%s0 + $0x78] sm:$0xff]
    %v44 = vld [vmem:[%s0 + $0x80] sm:$0xff]
    %v45 = vld [vmem:[%s0 + $0x88] sm:$0xff]
    %v46 = vld [vmem:[%s0 + $0x90] sm:$0xff]
    %v47 = vld [vmem:[%s0 + $0x98] sm:$0xff]
    %v48 = vld [vmem:[%s0 + $0xa0] sm:$0xff]
    %v49 = vld [vmem:[%s0 + $0xa8] sm:$0xff]
    %v50 = vld [vmem:[%s0 + $0xb0] sm:$0xff]
    %v51 = vld [vmem:[%s0 + $0xb8] sm:$0xff]
    %v52 = vld [vmem:[%s0 + $0xc0] sm:$0xff]
    %v53 = vld [vmem:[%s0 + $0xc8] sm:$0xff]
    %v54 = vld [vmem:[%s0 + $0xd0] sm:$0xff]
    %v55 = vld [vmem:[%s0 + $0xd8] sm:$0xff]
    %v56 = vld [vmem:[%s0 + $0xe0] sm:$0xff]
    %v57 = vld [vmem:[%s0 + $0xe8] sm:$0xff]
    %v58 = vld [vmem:[%s0 + $0xf0] sm:$0xff]
    %v59 = vld [vmem:[%s0 + $0xf8] sm:$0xff]
    %v60 = vld [vmem:[%s1] sm:$0xff]
    %v61 = vld [vmem:[%s1 + $0x8] sm:$0xff]
    %v62 = vld [vmem:[%s1 + $0x10] sm:$0xff]
    %v63 = vld [vmem:[%s1 + $0x18] sm:$0xff]
    %v64 = vld [vmem:[%s2] sm:$0x1]
    %v66 = vlaneseq
    %v67 = vshrl.u32 %v66, 7
    %v68 = vsub.s32 0, %v67
    %v69 = vrot.slane %v64, %v68
    %vm71 = vcmask 261120
    %v73 = vsel %vm71, %v28, 0
    %v76 = vsel %vm71, %v29, 0
    %v79 = vsel %vm71, %v30, 0
    %v82 = vsel %vm71, %v31, 0
    %v85 = vsel %vm71, %v32, 0
    %v88 = vsel %vm71, %v33, 0
    %v91 = vsel %vm71, %v34, 0
    %v94 = vsel %vm71, %v35, 0
    %v97 = vsel %vm71, %v36, 0
    %v100 = vsel %vm71, %v37, 0
    %v103 = vsel %vm71, %v38, 0
    %v106 = vsel %vm71, %v39, 0
    %v109 = vsel %vm71, %v40, 0
    %v112 = vsel %vm71, %v41, 0
    %v115 = vsel %vm71, %v42, 0
    %v118 = vsel %vm71, %v43, 0
    %v121 = vsel %vm71, %v44, 0
    %v124 = vsel %vm71, %v45, 0
    %v127 = vsel %vm71, %v46, 0
    %v130 = vsel %vm71, %v47, 0
    %v133 = vsel %vm71, %v48, 0
    %v136 = vsel %vm71, %v49, 0
    %v139 = vsel %vm71, %v50, 0
    %v142 = vsel %vm71, %v51, 0
    %v145 = vsel %vm71, %v52, 0
    %v148 = vsel %vm71, %v53, 0
    %v151 = vsel %vm71, %v54, 0
    %v154 = vsel %vm71, %v55, 0
    %v157 = vsel %vm71, %v56, 0
    %v160 = vsel %vm71, %v57, 0
    %v163 = vsel %vm71, %v58, 0
    %v166 = vsel %vm71, %v59, 0
    %168 = vmatprep.subr.mxu0 0.0
    %169 = vmatpush1.msra.mxu0 %v60
    %170 = vmatprep.subr.mxu0 0.0
    %171 = vmatpush1.msra.mxu0 %v61
    %172 = vmatprep.subr.mxu0 0.0
    %173 = vmatpush1.msra.mxu0 %v62
    %174 = vmatprep.subr.mxu0 0.0
    %175 = vmatpush1.msra.mxu0 %v63
    %176 = vmatprep.subr.mxu0 0.0
    %177 = vmatpush1.msra.mxu0 0.0
    %178 = vmatprep.subr.mxu0 0.0
    %179 = vmatpush1.msra.mxu0 0.0
    %180 = vmatprep.subr.mxu0 0.0
    %181 = vmatpush1.msra.mxu0 0.0
    %182 = vmatprep.subr.mxu0 0.0
    %183 = vmatpush1.msra.mxu0 0.0
    %184 = vmatprep.subr.mxu0 0.0
    %185 = vmatpush1.msra.mxu0 0.0
    %186 = vmatprep.subr.mxu0 0.0
    %187 = vmatpush1.msra.mxu0 0.0
    %188 = vmatprep.subr.mxu0 0.0
    %189 = vmatpush1.msra.mxu0 0.0
    %190 = vmatprep.subr.mxu0 0.0
    %191 = vmatpush1.msra.mxu0 0.0
    %192 = vmatprep.subr.mxu0 0.0
    %193 = vmatpush1.msra.mxu0 0.0
    %194 = vmatprep.subr.mxu0 0.0
    %195 = vmatpush1.msra.mxu0 0.0
    %196 = vmatprep.subr.mxu0 0.0
    %197 = vmatpush1.msra.mxu0 0.0
    %198 = vmatprep.subr.mxu0 0.0
    %199 = vmatpush1.msra.mxu0 0.0
    %200 = vmatprep.subr.mxu0 0.0
    %201 = vmatpush1.msra.mxu0 0.0
    %202 = vmatprep.subr.mxu0 0.0
    %203 = vmatpush1.msra.mxu0 0.0
    %204 = vmatprep.subr.mxu0 0.0
    %205 = vmatpush1.msra.mxu0 0.0
    %206 = vmatprep.subr.mxu0 0.0
    %207 = vmatpush1.msra.mxu0 0.0
    %208 = vmatprep.subr.mxu0 0.0
    %209 = vmatpush1.msra.mxu0 0.0
    %210 = vmatprep.subr.mxu0 0.0
    %211 = vmatpush1.msra.mxu0 0.0
    %212 = vmatprep.subr.mxu0 0.0
    %213 = vmatpush1.msra.mxu0 0.0
    %214 = vmatprep.subr.mxu0 0.0
    %215 = vmatpush1.msra.mxu0 0.0
    %216 = vmatprep.subr.mxu0 0.0
    %217 = vmatpush1.msra.mxu0 0.0
    %218 = vmatprep.subr.mxu0 0.0
    %219 = vmatpush1.msra.mxu0 0.0
    %220 = vmatprep.subr.mxu0 0.0
    %221 = vmatpush1.msra.mxu0 0.0
    %222 = vmatprep.subr.mxu0 0.0
    %223 = vmatpush1.msra.mxu0 0.0
    %224 = vmatprep.subr.mxu0 0.0
    %225 = vmatpush1.msra.mxu0 0.0
    %226 = vmatprep.subr.mxu0 0.0
    %227 = vmatpush1.msra.mxu0 0.0
    %228 = vmatprep.subr.mxu0 0.0
    %229 = vmatpush1.msra.mxu0 0.0
    %230 = vmatprep.subr.mxu0 0.0
    %231 = vmatpush1.msra.mxu0 0.0
    %232 = vmatprep.mubr.f32.mxu0 0.0
    %233 = vmatmul.mubr.f32.gmra.mrb[0].mxu0 %v73
    %v234 = vpop.f32.mrb[0].mxu0
    %v235 = vadd.f32 %v69, %v234
    %v236 = vpop.f32.mrb[0].mxu0
    %237 = vmatprep.mubr.f32.mxu0 0.0
    %238 = vmatmul.mubr.f32.gmra.mrb[0].mxu0 %v76
    %v239 = vpop.f32.mrb[0].mxu0
    %v240 = vadd.f32 %v69, %v239
    %v241 = vpop.f32.mrb[0].mxu0
    %242 = vmatprep.mubr.f32.mxu0 0.0
    %243 = vmatmul.mubr.f32.gmra.mrb[0].mxu0 %v79
    %v244 = vpop.f32.mrb[0].mxu0
    %v245 = vadd.f32 %v69, %v244
    %v246 = vpop.f32.mrb[0].mxu0
    %247 = vmatprep.mubr.f32.mxu0 0.0
    %248 = vmatmul.mubr.f32.gmra.mrb[0].mxu0 %v82
    %v249 = vpop.f32.mrb[0].mxu0
    %v250 = vadd.f32 %v69, %v249
    %v251 = vpop.f32.mrb[0].mxu0
    %252 = vmatprep.mubr.f32.mxu0 0.0
    %253 = vmatmul.mubr.f32.gmra.mrb[0].mxu0 %v85
    %v254 = vpop.f32.mrb[0].mxu0
    %v255 = vadd.f32 %v69, %v254
    %v256 = vpop.f32.mrb[0].mxu0
    %257 = vmatprep.mubr.f32.mxu0 0.0
    %258 = vmatmul.mubr.f32.gmra.mrb[0].mxu0 %v88
    %v259 = vpop.f32.mrb[0].mxu0
    %v260 = vadd.f32 %v69, %v259
    %v261 = vpop.f32.mrb[0].mxu0
    %262 = vmatprep.mubr.f32.mxu0 0.0
    %263 = vmatmul.mubr.f32.gmra.mrb[0].mxu0 %v91
    %v264 = vpop.f32.mrb[0].mxu0
    %v265 = vadd.f32 %v69, %v264
    %v266 = vpop.f32.mrb[0].mxu0
    %267 = vmatprep.mubr.f32.mxu0 0.0
    %268 = vmatmul.mubr.f32.gmra.mrb[0].mxu0 %v94
    %v269 = vpop.f32.mrb[0].mxu0
    %v270 = vadd.f32 %v69, %v269
    %v271 = vpop.f32.mrb[0].mxu0
    %272 = vmatprep.mubr.f32.mxu0 0.0
    %273 = vmatmul.mubr.f32.gmra.mrb[0].mxu0 %v97
    %v274 = vpop.f32.mrb[0].mxu0
    %v275 = vadd.f32 %v69, %v274
    %v276 = vpop.f32.mrb[0].mxu0
    %277 = vmatprep.mubr.f32.mxu0 0.0
    %278 = vmatmul.mubr.f32.gmra.mrb[0].mxu0 %v100
    %v279 = vpop.f32.mrb[0].mxu0
    %v280 = vadd.f32 %v69, %v279
    %v281 = vpop.f32.mrb[0].mxu0
    %282 = vmatprep.mubr.f32.mxu0 0.0
    %283 = vmatmul.mubr.f32.gmra.mrb[0].mxu0 %v103
    %v284 = vpop.f32.mrb[0].mxu0
    %v285 = vadd.f32 %v69, %v284
    %v286 = vpop.f32.mrb[0].mxu0
    %287 = vmatprep.mubr.f32.mxu0 0.0
    %288 = vmatmul.mubr.f32.gmra.mrb[0].mxu0 %v106
    %v289 = vpop.f32.mrb[0].mxu0
    %v290 = vadd.f32 %v69, %v289
    %v291 = vpop.f32.mrb[0].mxu0
    %292 = vmatprep.mubr.f32.mxu0 0.0
    %293 = vmatmul.mubr.f32.gmra.mrb[0].mxu0 %v109
    %v294 = vpop.f32.mrb[0].mxu0
    %v295 = vadd.f32 %v69, %v294
    %v296 = vpop.f32.mrb[0].mxu0
    %297 = vmatprep.mubr.f32.mxu0 0.0
    %298 = vmatmul.mubr.f32.gmra.mrb[0].mxu0 %v112
    %v299 = vpop.f32.mrb[0].mxu0
    %v300 = vadd.f32 %v69, %v299
    %v301 = vpop.f32.mrb[0].mxu0
    %302 = vmatprep.mubr.f32.mxu0 0.0
    %303 = vmatmul.mubr.f32.gmra.mrb[0].mxu0 %v115
    %v304 = vpop.f32.mrb[0].mxu0
    %v305 = vadd.f32 %v69, %v304
    %v306 = vpop.f32.mrb[0].mxu0
    %307 = vmatprep.mubr.f32.mxu0 0.0
    %308 = vmatmul.mubr.f32.gmra.mrb[0].mxu0 %v118
    %v309 = vpop.f32.mrb[0].mxu0
    %v310 = vadd.f32 %v69, %v309
    %v311 = vpop.f32.mrb[0].mxu0
    %312 = vmatprep.mubr.f32.mxu0 0.0
    %313 = vmatmul.mubr.f32.gmra.mrb[0].mxu0 %v121
    %v314 = vpop.f32.mrb[0].mxu0
    %v315 = vadd.f32 %v69, %v314
    %v316 = vpop.f32.mrb[0].mxu0
    %317 = vmatprep.mubr.f32.mxu0 0.0
    %318 = vmatmul.mubr.f32.gmra.mrb[0].mxu0 %v124
    %v319 = vpop.f32.mrb[0].mxu0
    %v320 = vadd.f32 %v69, %v319
    %v321 = vpop.f32.mrb[0].mxu0
    %322 = vmatprep.mubr.f32.mxu0 0.0
    %323 = vmatmul.mubr.f32.gmra.mrb[0].mxu0 %v127
    %v324 = vpop.f32.mrb[0].mxu0
    %v325 = vadd.f32 %v69, %v324
    %v326 = vpop.f32.mrb[0].mxu0
    %327 = vmatprep.mubr.f32.mxu0 0.0
    %328 = vmatmul.mubr.f32.gmra.mrb[0].mxu0 %v130
    %v329 = vpop.f32.mrb[0].mxu0
    %v330 = vadd.f32 %v69, %v329
    %v331 = vpop.f32.mrb[0].mxu0
    %332 = vmatprep.mubr.f32.mxu0 0.0
    %333 = vmatmul.mubr.f32.gmra.mrb[0].mxu0 %v133
    %v334 = vpop.f32.mrb[0].mxu0
    %v335 = vadd.f32 %v69, %v334
    %v336 = vpop.f32.mrb[0].mxu0
    %337 = vmatprep.mubr.f32.mxu0 0.0
    %338 = vmatmul.mubr.f32.gmra.mrb[0].mxu0 %v136
    %v339 = vpop.f32.mrb[0].mxu0
    %v340 = vadd.f32 %v69, %v339
    %v341 = vpop.f32.mrb[0].mxu0
    %342 = vmatprep.mubr.f32.mxu0 0.0
    %343 = vmatmul.mubr.f32.gmra.mrb[0].mxu0 %v139
    %v344 = vpop.f32.mrb[0].mxu0
    %v345 = vadd.f32 %v69, %v344
    %v346 = vpop.f32.mrb[0].mxu0
    %347 = vmatprep.mubr.f32.mxu0 0.0
    %348 = vmatmul.mubr.f32.gmra.mrb[0].mxu0 %v142
    %v349 = vpop.f32.mrb[0].mxu0
    %v350 = vadd.f32 %v69, %v349
    %v351 = vpop.f32.mrb[0].mxu0
    %352 = vmatprep.mubr.f32.mxu0 0.0
    %353 = vmatmul.mubr.f32.gmra.mrb[0].mxu0 %v145
    %v354 = vpop.f32.mrb[0].mxu0
    %v355 = vadd.f32 %v69, %v354
    %v356 = vpop.f32.mrb[0].mxu0
    %357 = vmatprep.mubr.f32.mxu0 0.0
    %358 = vmatmul.mubr.f32.gmra.mrb[0].mxu0 %v148
    %v359 = vpop.f32.mrb[0].mxu0
    %v360 = vadd.f32 %v69, %v359
    %v361 = vpop.f32.mrb[0].mxu0
    %362 = vmatprep.mubr.f32.mxu0 0.0
    %363 = vmatmul.mubr.f32.gmra.mrb[0].mxu0 %v151
    %v364 = vpop.f32.mrb[0].mxu0
    %v365 = vadd.f32 %v69, %v364
    %v366 = vpop.f32.mrb[0].mxu0
    %367 = vmatprep.mubr.f32.mxu0 0.0
    %368 = vmatmul.mubr.f32.gmra.mrb[0].mxu0 %v154
    %v369 = vpop.f32.mrb[0].mxu0
    %v370 = vadd.f32 %v69, %v369
    %v371 = vpop.f32.mrb[0].mxu0
    %372 = vmatprep.mubr.f32.mxu0 0.0
    %373 = vmatmul.mubr.f32.gmra.mrb[0].mxu0 %v157
    %v374 = vpop.f32.mrb[0].mxu0
    %v375 = vadd.f32 %v69, %v374
    %v376 = vpop.f32.mrb[0].mxu0
    %377 = vmatprep.mubr.f32.mxu0 0.0
    %378 = vmatmul.mubr.f32.gmra.mrb[0].mxu0 %v160
    %v379 = vpop.f32.mrb[0].mxu0
    %v380 = vadd.f32 %v69, %v379
    %v381 = vpop.f32.mrb[0].mxu0
    %382 = vmatprep.mubr.f32.mxu0 0.0
    %383 = vmatmul.mubr.f32.gmra.mrb[0].mxu0 %v163
    %v384 = vpop.f32.mrb[0].mxu0
    %v385 = vadd.f32 %v69, %v384
    %v386 = vpop.f32.mrb[0].mxu0
    %387 = vmatprep.mubr.f32.mxu0 0.0
    %388 = vmatmul.mubr.f32.gmra.mrb[0].mxu0 %v166
    %v389 = vpop.f32.mrb[0].mxu0
    %v390 = vadd.f32 %v69, %v389
    %v391 = vpop.f32.mrb[0].mxu0
    %392 = vdwg.mxu0
    %v393 = vmul.f32 %v235, 0.1
    %v394 = vmul.f32 %v240, 0.1
    %v395 = vmul.f32 %v245, 0.1
    %v396 = vmul.f32 %v250, 0.1
    %v397 = vmul.f32 %v255, 0.1
    %v398 = vmul.f32 %v260, 0.1
    %v399 = vmul.f32 %v265, 0.1
    %v400 = vmul.f32 %v270, 0.1
    %v401 = vmul.f32 %v275, 0.1
    %v402 = vmul.f32 %v280, 0.1
    %v403 = vmul.f32 %v285, 0.1
    %v404 = vmul.f32 %v290, 0.1
    %v405 = vmul.f32 %v295, 0.1
    %v406 = vmul.f32 %v300, 0.1
    %v407 = vmul.f32 %v305, 0.1
    %v408 = vmul.f32 %v310, 0.1
    %v409 = vmul.f32 %v315, 0.1
    %v410 = vmul.f32 %v320, 0.1
    %v411 = vmul.f32 %v325, 0.1
    %v412 = vmul.f32 %v330, 0.1
    %v413 = vmul.f32 %v335, 0.1
    %v414 = vmul.f32 %v340, 0.1
    %v415 = vmul.f32 %v345, 0.1
    %v416 = vmul.f32 %v350, 0.1
    %v417 = vmul.f32 %v355, 0.1
    %v418 = vmul.f32 %v360, 0.1
    %v419 = vmul.f32 %v365, 0.1
    %v420 = vmul.f32 %v370, 0.1
    %v421 = vmul.f32 %v375, 0.1
    %v422 = vmul.f32 %v380, 0.1
    %v423 = vmul.f32 %v385, 0.1
    %v424 = vmul.f32 %v390, 0.1
    %v425 = vmax.f32 %v235, %v393
    %v426 = vmax.f32 %v240, %v394
    %v427 = vmax.f32 %v245, %v395
    %v428 = vmax.f32 %v250, %v396
    %v429 = vmax.f32 %v255, %v397
    %v430 = vmax.f32 %v260, %v398
    %v431 = vmax.f32 %v265, %v399
    %v432 = vmax.f32 %v270, %v400
    %v433 = vmax.f32 %v275, %v401
    %v434 = vmax.f32 %v280, %v402
    %v435 = vmax.f32 %v285, %v403
    %v436 = vmax.f32 %v290, %v404
    %v437 = vmax.f32 %v295, %v405
    %v438 = vmax.f32 %v300, %v406
    %v439 = vmax.f32 %v305, %v407
    %v440 = vmax.f32 %v310, %v408
    %v441 = vmax.f32 %v315, %v409
    %v442 = vmax.f32 %v320, %v410
    %v443 = vmax.f32 %v325, %v411
    %v444 = vmax.f32 %v330, %v412
    %v445 = vmax.f32 %v335, %v413
    %v446 = vmax.f32 %v340, %v414
    %v447 = vmax.f32 %v345, %v415
    %v448 = vmax.f32 %v350, %v416
    %v449 = vmax.f32 %v355, %v417
    %v450 = vmax.f32 %v360, %v418
    %v451 = vmax.f32 %v365, %v419
    %v452 = vmax.f32 %v370, %v420
    %v453 = vmax.f32 %v375, %v421
    %v454 = vmax.f32 %v380, %v422
    %v455 = vmax.f32 %v385, %v423
    %v456 = vmax.f32 %v390, %v424
    %v457 = vld [vmem:[%s3] sm:$0xff]
    %v458 = vld [vmem:[%s3 + $0x8] sm:$0xff]
    %v459 = vld [vmem:[%s3 + $0x10] sm:$0xff]
    %v460 = vld [vmem:[%s3 + $0x18] sm:$0xff]
    %v461 = vld [vmem:[%s3 + $0x20] sm:$0xff]
    %v462 = vld [vmem:[%s3 + $0x28] sm:$0xff]
    %v463 = vld [vmem:[%s3 + $0x30] sm:$0xff]
    %v464 = vld [vmem:[%s3 + $0x38] sm:$0xff]
    %v465 = vld [vmem:[%s3 + $0x40] sm:$0xff]
    %v466 = vld [vmem:[%s3 + $0x48] sm:$0xff]
    %v467 = vld [vmem:[%s3 + $0x50] sm:$0xff]
    %v468 = vld [vmem:[%s3 + $0x58] sm:$0xff]
    %v469 = vld [vmem:[%s3 + $0x60] sm:$0xff]
    %v470 = vld [vmem:[%s3 + $0x68] sm:$0xff]
    %v471 = vld [vmem:[%s3 + $0x70] sm:$0xff]
    %v472 = vld [vmem:[%s3 + $0x78] sm:$0xff]
    %v473 = vld [vmem:[%s4] sm:$0x1]
    %v475 = vlaneseq
    %v476 = vshrl.u32 %v475, 7
    %v477 = vsub.s32 0, %v476
    %v478 = vrot.slane %v473, %v477
    %480 = vmatprep.subr.mxu0 0.0
    %481 = vmatpush1.msra.mxu0 %v457
    %482 = vmatprep.subr.mxu0 0.0
    %483 = vmatpush1.msra.mxu0 %v458
    %484 = vmatprep.subr.mxu0 0.0
    %485 = vmatpush1.msra.mxu0 %v459
    %486 = vmatprep.subr.mxu0 0.0
    %487 = vmatpush1.msra.mxu0 %v460
    %488 = vmatprep.subr.mxu0 0.0
    %489 = vmatpush1.msra.mxu0 %v461
    %490 = vmatprep.subr.mxu0 0.0
    %491 = vmatpush1.msra.mxu0 %v462
    %492 = vmatprep.subr.mxu0 0.0
    %493 = vmatpush1.msra.mxu0 %v463
    %494 = vmatprep.subr.mxu0 0.0
    %495 = vmatpush1.msra.mxu0 %v464
    %496 = vmatprep.subr.mxu0 0.0
    %497 = vmatpush1.msra.mxu0 %v465
    %498 = vmatprep.subr.mxu0 0.0
    %499 = vmatpush1.msra.mxu0 %v466
    %500 = vmatprep.subr.mxu0 0.0
    %501 = vmatpush1.msra.mxu0 %v467
    %502 = vmatprep.subr.mxu0 0.0
    %503 = vmatpush1.msra.mxu0 %v468
    %504 = vmatprep.subr.mxu0 0.0
    %505 = vmatpush1.msra.mxu0 %v469
    %506 = vmatprep.subr.mxu0 0.0
    %507 = vmatpush1.msra.mxu0 %v470
    %508 = vmatprep.subr.mxu0 0.0
    %509 = vmatpush1.msra.mxu0 %v471
    %510 = vmatprep.subr.mxu0 0.0
    %511 = vmatpush1.msra.mxu0 %v472
    %512 = vmatprep.subr.mxu0 0.0
    %513 = vmatpush1.msra.mxu0 0.0
    %514 = vmatprep.subr.mxu0 0.0
    %515 = vmatpush1.msra.mxu0 0.0
    %516 = vmatprep.subr.mxu0 0.0
    %517 = vmatpush1.msra.mxu0 0.0
    %518 = vmatprep.subr.mxu0 0.0
    %519 = vmatpush1.msra.mxu0 0.0
    %520 = vmatprep.subr.mxu0 0.0
    %521 = vmatpush1.msra.mxu0 0.0
    %522 = vmatprep.subr.mxu0 0.0
    %523 = vmatpush1.msra.mxu0 0.0
    %524 = vmatprep.subr.mxu0 0.0
    %525 = vmatpush1.msra.mxu0 0.0
    %526 = vmatprep.subr.mxu0 0.0
    %527 = vmatpush1.msra.mxu0 0.0
    %528 = vmatprep.subr.mxu0 0.0
    %529 = vmatpush1.msra.mxu0 0.0
    %530 = vmatprep.subr.mxu0 0.0
    %531 = vmatpush1.msra.mxu0 0.0
    %532 = vmatprep.subr.mxu0 0.0
    %533 = vmatpush1.msra.mxu0 0.0
    %534 = vmatprep.subr.mxu0 0.0
    %535 = vmatpush1.msra.mxu0 0.0
    %536 = vmatprep.subr.mxu0 0.0
    %537 = vmatpush1.msra.mxu0 0.0
    %538 = vmatprep.subr.mxu0 0.0
    %539 = vmatpush1.msra.mxu0 0.0
    %540 = vmatprep.subr.mxu0 0.0
    %541 = vmatpush1.msra.mxu0 0.0
    %542 = vmatprep.subr.mxu0 0.0
    %543 = vmatpush1.msra.mxu0 0.0
    %544 = vmatprep.mubr.f32.mxu0 0.0
    %545 = vmatmul.mubr.f32.gmra.mrb[0].mxu0 %v425
    %v546 = vpop.f32.mrb[0].mxu0
    %v547 = vadd.f32 %v478, %v546
    %v548 = vpop.f32.mrb[0].mxu0
    %549 = vmatprep.mubr.f32.mxu0 0.0
    %550 = vmatmul.mubr.f32.gmra.mrb[0].mxu0 %v426
    %v551 = vpop.f32.mrb[0].mxu0
    %v552 = vadd.f32 %v478, %v551
    %v553 = vpop.f32.mrb[0].mxu0
    %554 = vmatprep.mubr.f32.mxu0 0.0
    %555 = vmatmul.mubr.f32.gmra.mrb[0].mxu0 %v427
    %v556 = vpop.f32.mrb[0].mxu0
    %v557 = vadd.f32 %v478, %v556
    %v558 = vpop.f32.mrb[0].mxu0
    %559 = vmatprep.mubr.f32.mxu0 0.0
    %560 = vmatmul.mubr.f32.gmra.mrb[0].mxu0 %v428
    %v561 = vpop.f32.mrb[0].mxu0
    %v562 = vadd.f32 %v478, %v561
    %v563 = vpop.f32.mrb[0].mxu0
    %564 = vmatprep.mubr.f32.mxu0 0.0
    %565 = vmatmul.mubr.f32.gmra.mrb[0].mxu0 %v429
    %v566 = vpop.f32.mrb[0].mxu0
    %v567 = vadd.f32 %v478, %v566
    %v568 = vpop.f32.mrb[0].mxu0
    %569 = vmatprep.mubr.f32.mxu0 0.0
    %570 = vmatmul.mubr.f32.gmra.mrb[0].mxu0 %v430
    %v571 = vpop.f32.mrb[0].mxu0
    %v572 = vadd.f32 %v478, %v571
    %v573 = vpop.f32.mrb[0].mxu0
    %574 = vmatprep.mubr.f32.mxu0 0.0
    %575 = vmatmul.mubr.f32.gmra.mrb[0].mxu0 %v431
    %v576 = vpop.f32.mrb[0].mxu0
    %v577 = vadd.f32 %v478, %v576
    %v578 = vpop.f32.mrb[0].mxu0
    %579 = vmatprep.mubr.f32.mxu0 0.0
    %580 = vmatmul.mubr.f32.gmra.mrb[0].mxu0 %v432
    %v581 = vpop.f32.mrb[0].mxu0
    %v582 = vadd.f32 %v478, %v581
    %v583 = vpop.f32.mrb[0].mxu0
    %584 = vmatprep.mubr.f32.mxu0 0.0
    %585 = vmatmul.mubr.f32.gmra.mrb[0].mxu0 %v433
    %v586 = vpop.f32.mrb[0].mxu0
    %v587 = vadd.f32 %v478, %v586
    %v588 = vpop.f32.mrb[0].mxu0
    %589 = vmatprep.mubr.f32.mxu0 0.0
    %590 = vmatmul.mubr.f32.gmra.mrb[0].mxu0 %v434
    %v591 = vpop.f32.mrb[0].mxu0
    %v592 = vadd.f32 %v478, %v591
    %v593 = vpop.f32.mrb[0].mxu0
    %594 = vmatprep.mubr.f32.mxu0 0.0
    %595 = vmatmul.mubr.f32.gmra.mrb[0].mxu0 %v435
    %v596 = vpop.f32.mrb[0].mxu0
    %v597 = vadd.f32 %v478, %v596
    %v598 = vpop.f32.mrb[0].mxu0
    %599 = vmatprep.mubr.f32.mxu0 0.0
    %600 = vmatmul.mubr.f32.gmra.mrb[0].mxu0 %v436
    %v601 = vpop.f32.mrb[0].mxu0
    %v602 = vadd.f32 %v478, %v601
    %v603 = vpop.f32.mrb[0].mxu0
    %604 = vmatprep.mubr.f32.mxu0 0.0
    %605 = vmatmul.mubr.f32.gmra.mrb[0].mxu0 %v437
    %v606 = vpop.f32.mrb[0].mxu0
    %v607 = vadd.f32 %v478, %v606
    %v608 = vpop.f32.mrb[0].mxu0
    %609 = vmatprep.mubr.f32.mxu0 0.0
    %610 = vmatmul.mubr.f32.gmra.mrb[0].mxu0 %v438
    %v611 = vpop.f32.mrb[0].mxu0
    %v612 = vadd.f32 %v478, %v611
    %v613 = vpop.f32.mrb[0].mxu0
    %614 = vmatprep.mubr.f32.mxu0 0.0
    %615 = vmatmul.mubr.f32.gmra.mrb[0].mxu0 %v439
    %v616 = vpop.f32.mrb[0].mxu0
    %v617 = vadd.f32 %v478, %v616
    %v618 = vpop.f32.mrb[0].mxu0
    %619 = vmatprep.mubr.f32.mxu0 0.0
    %620 = vmatmul.mubr.f32.gmra.mrb[0].mxu0 %v440
    %v621 = vpop.f32.mrb[0].mxu0
    %v622 = vadd.f32 %v478, %v621
    %v623 = vpop.f32.mrb[0].mxu0
    %624 = vmatprep.mubr.f32.mxu0 0.0
    %625 = vmatmul.mubr.f32.gmra.mrb[0].mxu0 %v441
    %v626 = vpop.f32.mrb[0].mxu0
    %v627 = vadd.f32 %v478, %v626
    %v628 = vpop.f32.mrb[0].mxu0
    %629 = vmatprep.mubr.f32.mxu0 0.0
    %630 = vmatmul.mubr.f32.gmra.mrb[0].mxu0 %v442
    %v631 = vpop.f32.mrb[0].mxu0
    %v632 = vadd.f32 %v478, %v631
    %v633 = vpop.f32.mrb[0].mxu0
    %634 = vmatprep.mubr.f32.mxu0 0.0
    %635 = vmatmul.mubr.f32.gmra.mrb[0].mxu0 %v443
    %v636 = vpop.f32.mrb[0].mxu0
    %v637 = vadd.f32 %v478, %v636
    %v638 = vpop.f32.mrb[0].mxu0
    %639 = vmatprep.mubr.f32.mxu0 0.0
    %640 = vmatmul.mubr.f32.gmra.mrb[0].mxu0 %v444
    %v641 = vpop.f32.mrb[0].mxu0
    %v642 = vadd.f32 %v478, %v641
    %v643 = vpop.f32.mrb[0].mxu0
    %644 = vmatprep.mubr.f32.mxu0 0.0
    %645 = vmatmul.mubr.f32.gmra.mrb[0].mxu0 %v445
    %v646 = vpop.f32.mrb[0].mxu0
    %v647 = vadd.f32 %v478, %v646
    %v648 = vpop.f32.mrb[0].mxu0
    %649 = vmatprep.mubr.f32.mxu0 0.0
    %650 = vmatmul.mubr.f32.gmra.mrb[0].mxu0 %v446
    %v651 = vpop.f32.mrb[0].mxu0
    %v652 = vadd.f32 %v478, %v651
    %v653 = vpop.f32.mrb[0].mxu0
    %654 = vmatprep.mubr.f32.mxu0 0.0
    %655 = vmatmul.mubr.f32.gmra.mrb[0].mxu0 %v447
    %v656 = vpop.f32.mrb[0].mxu0
    %v657 = vadd.f32 %v478, %v656
    %v658 = vpop.f32.mrb[0].mxu0
    %659 = vmatprep.mubr.f32.mxu0 0.0
    %660 = vmatmul.mubr.f32.gmra.mrb[0].mxu0 %v448
    %v661 = vpop.f32.mrb[0].mxu0
    %v662 = vadd.f32 %v478, %v661
    %v663 = vpop.f32.mrb[0].mxu0
    %664 = vmatprep.mubr.f32.mxu0 0.0
    %665 = vmatmul.mubr.f32.gmra.mrb[0].mxu0 %v449
    %v666 = vpop.f32.mrb[0].mxu0
    %v667 = vadd.f32 %v478, %v666
    %v668 = vpop.f32.mrb[0].mxu0
    %669 = vmatprep.mubr.f32.mxu0 0.0
    %670 = vmatmul.mubr.f32.gmra.mrb[0].mxu0 %v450
    %v671 = vpop.f32.mrb[0].mxu0
    %v672 = vadd.f32 %v478, %v671
    %v673 = vpop.f32.mrb[0].mxu0
    %674 = vmatprep.mubr.f32.mxu0 0.0
    %675 = vmatmul.mubr.f32.gmra.mrb[0].mxu0 %v451
    %v676 = vpop.f32.mrb[0].mxu0
    %v677 = vadd.f32 %v478, %v676
    %v678 = vpop.f32.mrb[0].mxu0
    %679 = vmatprep.mubr.f32.mxu0 0.0
    %680 = vmatmul.mubr.f32.gmra.mrb[0].mxu0 %v452
    %v681 = vpop.f32.mrb[0].mxu0
    %v682 = vadd.f32 %v478, %v681
    %v683 = vpop.f32.mrb[0].mxu0
    %684 = vmatprep.mubr.f32.mxu0 0.0
    %685 = vmatmul.mubr.f32.gmra.mrb[0].mxu0 %v453
    %v686 = vpop.f32.mrb[0].mxu0
    %v687 = vadd.f32 %v478, %v686
    %v688 = vpop.f32.mrb[0].mxu0
    %689 = vmatprep.mubr.f32.mxu0 0.0
    %690 = vmatmul.mubr.f32.gmra.mrb[0].mxu0 %v454
    %v691 = vpop.f32.mrb[0].mxu0
    %v692 = vadd.f32 %v478, %v691
    %v693 = vpop.f32.mrb[0].mxu0
    %694 = vmatprep.mubr.f32.mxu0 0.0
    %695 = vmatmul.mubr.f32.gmra.mrb[0].mxu0 %v455
    %v696 = vpop.f32.mrb[0].mxu0
    %v697 = vadd.f32 %v478, %v696
    %v698 = vpop.f32.mrb[0].mxu0
    %699 = vmatprep.mubr.f32.mxu0 0.0
    %700 = vmatmul.mubr.f32.gmra.mrb[0].mxu0 %v456
    %v701 = vpop.f32.mrb[0].mxu0
    %v702 = vadd.f32 %v478, %v701
    %v703 = vpop.f32.mrb[0].mxu0
    %704 = vdwg.mxu0
    %v705 = vmul.f32 %v547, 0.1
    %v706 = vmul.f32 %v552, 0.1
    %v707 = vmul.f32 %v557, 0.1
    %v708 = vmul.f32 %v562, 0.1
    %v709 = vmul.f32 %v567, 0.1
    %v710 = vmul.f32 %v572, 0.1
    %v711 = vmul.f32 %v577, 0.1
    %v712 = vmul.f32 %v582, 0.1
    %v713 = vmul.f32 %v587, 0.1
    %v714 = vmul.f32 %v592, 0.1
    %v715 = vmul.f32 %v597, 0.1
    %v716 = vmul.f32 %v602, 0.1
    %v717 = vmul.f32 %v607, 0.1
    %v718 = vmul.f32 %v612, 0.1
    %v719 = vmul.f32 %v617, 0.1
    %v720 = vmul.f32 %v622, 0.1
    %v721 = vmul.f32 %v627, 0.1
    %v722 = vmul.f32 %v632, 0.1
    %v723 = vmul.f32 %v637, 0.1
    %v724 = vmul.f32 %v642, 0.1
    %v725 = vmul.f32 %v647, 0.1
    %v726 = vmul.f32 %v652, 0.1
    %v727 = vmul.f32 %v657, 0.1
    %v728 = vmul.f32 %v662, 0.1
    %v729 = vmul.f32 %v667, 0.1
    %v730 = vmul.f32 %v672, 0.1
    %v731 = vmul.f32 %v677, 0.1
    %v732 = vmul.f32 %v682, 0.1
    %v733 = vmul.f32 %v687, 0.1
    %v734 = vmul.f32 %v692, 0.1
    %v735 = vmul.f32 %v697, 0.1
    %v736 = vmul.f32 %v702, 0.1
    %v737 = vmax.f32 %v547, %v705
    %v738 = vmax.f32 %v552, %v706
    %v739 = vmax.f32 %v557, %v707
    %v740 = vmax.f32 %v562, %v708
    %v741 = vmax.f32 %v567, %v709
    %v742 = vmax.f32 %v572, %v710
    %v743 = vmax.f32 %v577, %v711
    %v744 = vmax.f32 %v582, %v712
    %v745 = vmax.f32 %v587, %v713
    %v746 = vmax.f32 %v592, %v714
    %v747 = vmax.f32 %v597, %v715
    %v748 = vmax.f32 %v602, %v716
    %v749 = vmax.f32 %v607, %v717
    %v750 = vmax.f32 %v612, %v718
    %v751 = vmax.f32 %v617, %v719
    %v752 = vmax.f32 %v622, %v720
    %v753 = vmax.f32 %v627, %v721
    %v754 = vmax.f32 %v632, %v722
    %v755 = vmax.f32 %v637, %v723
    %v756 = vmax.f32 %v642, %v724
    %v757 = vmax.f32 %v647, %v725
    %v758 = vmax.f32 %v652, %v726
    %v759 = vmax.f32 %v657, %v727
    %v760 = vmax.f32 %v662, %v728
    %v761 = vmax.f32 %v667, %v729
    %v762 = vmax.f32 %v672, %v730
    %v763 = vmax.f32 %v677, %v731
    %v764 = vmax.f32 %v682, %v732
    %v765 = vmax.f32 %v687, %v733
    %v766 = vmax.f32 %v692, %v734
    %v767 = vmax.f32 %v697, %v735
    %v768 = vmax.f32 %v702, %v736
    %v769 = vld [vmem:[%s5] sm:$0x1]
    %s770 = sld [smem:[#allocation2]]
    %v771 = vstv %s770
    %772 = vmatprep.subr.mxu0 0.0
    %773 = vmatpush1.xpose.msra.mxu0 %v737
    %774 = vmatprep.subr.mxu0 0.0
    %775 = vmatpush1.xpose.msra.mxu0 %v738
    %776 = vmatprep.subr.mxu0 0.0
    %777 = vmatpush1.xpose.msra.mxu0 %v739
    %778 = vmatprep.subr.mxu0 0.0
    %779 = vmatpush1.xpose.msra.mxu0 %v740
    %780 = vmatprep.subr.mxu0 0.0
    %781 = vmatpush1.xpose.msra.mxu0 %v741
    %782 = vmatprep.subr.mxu0 0.0
    %783 = vmatpush1.xpose.msra.mxu0 %v742
    %784 = vmatprep.subr.mxu0 0.0
    %785 = vmatpush1.xpose.msra.mxu0 %v743
    %786 = vmatprep.subr.mxu0 0.0
    %787 = vmatpush1.xpose.msra.mxu0 %v744
    %788 = vmatprep.subr.mxu0 0.0
    %789 = vmatpush1.xpose.msra.mxu0 %v745
    %790 = vmatprep.subr.mxu0 0.0
    %791 = vmatpush1.xpose.msra.mxu0 %v746
    %792 = vmatprep.subr.mxu0 0.0
    %793 = vmatpush1.xpose.msra.mxu0 %v747
    %794 = vmatprep.subr.mxu0 0.0
    %795 = vmatpush1.xpose.msra.mxu0 %v748
    %796 = vmatprep.subr.mxu0 0.0
    %797 = vmatpush1.xpose.msra.mxu0 %v749
    %798 = vmatprep.subr.mxu0 0.0
    %799 = vmatpush1.xpose.msra.mxu0 %v750
    %800 = vmatprep.subr.mxu0 0.0
    %801 = vmatpush1.xpose.msra.mxu0 %v751
    %802 = vmatprep.subr.mxu0 0.0
    %803 = vmatpush1.xpose.msra.mxu0 %v752
    %804 = vmatprep.subr.mxu0 0.0
    %805 = vmatpush1.xpose.msra.mxu0 %v753
    %806 = vmatprep.subr.mxu0 0.0
    %807 = vmatpush1.xpose.msra.mxu0 %v754
    %808 = vmatprep.subr.mxu0 0.0
    %809 = vmatpush1.xpose.msra.mxu0 %v755
    %810 = vmatprep.subr.mxu0 0.0
    %811 = vmatpush1.xpose.msra.mxu0 %v756
    %812 = vmatprep.subr.mxu0 0.0
    %813 = vmatpush1.xpose.msra.mxu0 %v757
    %814 = vmatprep.subr.mxu0 0.0
    %815 = vmatpush1.xpose.msra.mxu0 %v758
    %816 = vmatprep.subr.mxu0 0.0
    %817 = vmatpush1.xpose.msra.mxu0 %v759
    %818 = vmatprep.subr.mxu0 0.0
    %819 = vmatpush1.xpose.msra.mxu0 %v760
    %820 = vmatprep.subr.mxu0 0.0
    %821 = vmatpush1.xpose.msra.mxu0 %v761
    %822 = vmatprep.subr.mxu0 0.0
    %823 = vmatpush1.xpose.msra.mxu0 %v762
    %824 = vmatprep.subr.mxu0 0.0
    %825 = vmatpush1.xpose.msra.mxu0 %v763
    %826 = vmatprep.subr.mxu0 0.0
    %827 = vmatpush1.xpose.msra.mxu0 %v764
    %828 = vmatprep.subr.mxu0 0.0
    %829 = vmatpush1.xpose.msra.mxu0 %v765
    %830 = vmatprep.subr.mxu0 0.0
    %831 = vmatpush1.xpose.msra.mxu0 %v766
    %832 = vmatprep.subr.mxu0 0.0
    %833 = vmatpush1.xpose.msra.mxu0 %v767
    %834 = vmatprep.subr.mxu0 0.0
    %835 = vmatpush1.xpose.msra.mxu0 %v768
    %836 = vmatprep.mubr.f32.mxu0 0.0
    %837 = vmatmul.mubr.f32.gmra.mrb[0].mxu0 %v769
    %v838 = vpop.f32.mrb[0].mxu0
    %v839 = vadd.f32 %v771, %v838
    %v840 = vpop.f32.mrb[0].mxu0
    %v841 = vadd.f32 %v771, %v840
    %842 = vdwg.mxu0
    %v845 = vcombine.low %v839, %v841
    %v847 = vunpack.c.l.s4 1966171168
    %v848 = vunpack.c.0.s8 %v847
    %v849 = vlaneseq
    %v850 = vshrl.u32 %v849, 7
    %v851 = vsub.s32 %v848, %v850
    %v852 = vrot.slane %v845, %v851
    %v854 = vunpack.c.l.s4 1966171168
    %v855 = vunpack.c.0.s8 %v854
    %v856 = vlaneseq
    %v857 = vshrl.u32 %v856, 7
    %v858 = vsub.s32 %v855, %v857
    %v859 = vrot.slane %v852, %v858
    %v861 = vlaneseq
    %vm862 = vcmp.ge.s32.totalorder %v861, 0
    %vm863 = vcmp.lt.s32.totalorder %v861, 256
    %vm864 = vmand %vm862, %vm863
    %865 = vst.msk [vmem:[#allocation3] sm:$0x3] %vm864, %v859
    // Predicated region
    $region30: #{tpu_custom_call.1} parent=1 // pred_check
      _
    $region31: #{tpu_custom_call.1} parent=1 // pred_check_branch
      %867 = sbr.rel (0) target = $region33
    $region32: #{tpu_custom_call.1} parent=1 // pred_region
      %s869 = ssub.s32 32, 32
      %870 = vsyncadd [#allocation4], %s869
      %s872 = sshll.u32 [#allocation3], 4
      %s873 = int_to_ptr.vmem [resolvable:$true] %s872
      %875 = dma.vmem_to_hbm [thread:$0]  %s873, 32, %s7, [#allocation4]
    $region33: #{tpu_custom_call.1} parent=1 // pred_fallthru
      _
    // Predicated region
    $region34: #{tpu_custom_call.1} parent=1 // pred_check
      _
    $region35: #{tpu_custom_call.1} parent=1 // pred_check_branch
      %877 = sbr.rel (0) target = $region37
    $region36: #{tpu_custom_call.1} parent=1 // pred_region
      %878 = dma.done [#allocation4], 32
    $region37: #{tpu_custom_call.1} parent=1 // pred_fallthru
      _
    %879 = vsyncpa [#allocation4], 1

// kernel: tpu_custom_call.1
$region0: #{tpu_custom_call.1}
  #allocation0 [shape = 'u32[]', space=smem, size = 0x4, offset = 0x4, fixed_abs, tag = 'smem constant byte address 0x4 - core index']
  #allocation1 [shape = 'u32[144,128]{1,0:T(1,128)}', space=vmem, size = 0x12000, scoped, tag = 'internal scratch']
  #allocation2 [shape = 'f32[1,1]{1,0:T(1,128)S(6)}', space=smem, size = 0x200, scoped, tag = 'scoped memory for tpu_custom_call.1']
  %s0 = inlined_call_operand.vmem [shape: f32[256,32], index: 0, kind: input, shape index: {}]
  %s1 = inlined_call_operand.vmem [shape: f32[32,128], index: 1, kind: input, shape index: {}]
  %s2 = inlined_call_operand.vmem [shape: f32[1,128], index: 2, kind: input, shape index: {}]
  %s3 = inlined_call_operand.vmem [shape: f32[128,128], index: 3, kind: input, shape index: {}]
  %s4 = inlined_call_operand.vmem [shape: f32[1,128], index: 4, kind: input, shape index: {}]
  %s5 = inlined_call_operand.vmem [shape: f32[1,128], index: 5, kind: input, shape index: {}]
  %s6 = inlined_call_operand.<no memory space> [shape: f32[1,1], index: 6, kind: input, shape index: {}]
  %s7 = inlined_call_operand.hbm [shape: f32[1,1,256], index: 7, kind: output, shape index: {}]
  %s8 = sld [smem:[#allocation0]]
  $region38: #{tpu_custom_call.1} parent=0
    _
  %s10 = ssub.s32 1, %s8
  %s11 = scalar_select 0, %s10, %s8
  %12 = sst [smem:[#allocation2]] %s6
  $region1: #{tpu_custom_call.1} parent=0
    #allocation3 [shape = 'u8[1024]{0}', space=vmem, size = 0x400, scoped, tag = 'output window, operand 0, single buffered']
    #allocation4 [shape = 's32[1]{0}', space=sflag, size = 0x4, scoped, tag = 'scoped memory for tpu_custom_call.1']
    %13 = vsyncpa [#allocation4], 0
    // Predicated region
    $region2: #{tpu_custom_call.1} parent=1 // pred_check
      _
    $region3: #{tpu_custom_call.1} parent=1 // pred_check_branch
      %15 = sbr.rel (0) target = $region5
    $region4: #{tpu_custom_call.1} parent=1 // pred_region
      _
    $region5: #{tpu_custom_call.1} parent=1 // pred_fallthru
      _
    // Predicated region
    $region6: #{tpu_custom_call.1} parent=1 // pred_check
      _
    $region7: #{tpu_custom_call.1} parent=1 // pred_check_branch
      %17 = sbr.rel (0) target = $region9
    $region8: #{tpu_custom_call.1} parent=1 // pred_region
      _
    $region9: #{tpu_custom_call.1} parent=1 // pred_fallthru
      _
    // Predicated region
    $region10: #{tpu_custom_call.1} parent=1 // pred_check
      _
    $region11: #{tpu_custom_call.1} parent=1 // pred_check_branch
      %19 = sbr.rel (0) target = $region13
    $region12: #{tpu_custom_call.1} parent=1 // pred_region
      _
    $region13: #{tpu_custom_call.1} parent=1 // pred_fallthru
      _
    // Predicated region
    $region14: #{tpu_custom_call.1} parent=1 // pred_check
      _
    $region15: #{tpu_custom_call.1} parent=1 // pred_check_branch
      %21 = sbr.rel (0) target = $region17
    $region16: #{tpu_custom_call.1} parent=1 // pred_region
      _
    $region17: #{tpu_custom_call.1} parent=1 // pred_fallthru
      _
    // Predicated region
    $region18: #{tpu_custom_call.1} parent=1 // pred_check
      _
    $region19: #{tpu_custom_call.1} parent=1 // pred_check_branch
      %23 = sbr.rel (0) target = $region21
    $region20: #{tpu_custom_call.1} parent=1 // pred_region
      _
    $region21: #{tpu_custom_call.1} parent=1 // pred_fallthru
      _
    // Predicated region
    $region22: #{tpu_custom_call.1} parent=1 // pred_check
      _
    $region23: #{tpu_custom_call.1} parent=1 // pred_check_branch
      %25 = sbr.rel (0) target = $region25
    $region24: #{tpu_custom_call.1} parent=1 // pred_region
      _
    $region25: #{tpu_custom_call.1} parent=1 // pred_fallthru
      _
    // Predicated region
    $region26: #{tpu_custom_call.1} parent=1 // pred_check
      _
    $region27: #{tpu_custom_call.1} parent=1 // pred_check_branch
      %27 = sbr.rel (0) target = $region29
    $region28: #{tpu_custom_call.1} parent=1 // pred_region
      _
    $region29: #{tpu_custom_call.1} parent=1 // pred_fallthru
      _
    %v28 = vld [vmem:[%s0] sm:$0xff]
    %v29 = vld [vmem:[%s0 + $0x8] sm:$0xff]
    %v30 = vld [vmem:[%s0 + $0x10] sm:$0xff]
    %v31 = vld [vmem:[%s0 + $0x18] sm:$0xff]
    %v32 = vld [vmem:[%s0 + $0x20] sm:$0xff]
    %v33 = vld [vmem:[%s0 + $0x28] sm:$0xff]
    %v34 = vld [vmem:[%s0 + $0x30] sm:$0xff]
    %v35 = vld [vmem:[%s0 + $0x38] sm:$0xff]
    %v36 = vld [vmem:[%s0 + $0x40] sm:$0xff]
    %v37 = vld [vmem:[%s0 + $0x48] sm:$0xff]
    %v38 = vld [vmem:[%s0 + $0x50] sm:$0xff]
    %v39 = vld [vmem:[%s0 + $0x58] sm:$0xff]
    %v40 = vld [vmem:[%s0 + $0x60] sm:$0xff]
    %v41 = vld [vmem:[%s0 + $0x68] sm:$0xff]
    %v42 = vld [vmem:[%s0 + $0x70] sm:$0xff]
    %v43 = vld [vmem:[%s0 + $0x78] sm:$0xff]
    %v44 = vld [vmem:[%s0 + $0x80] sm:$0xff]
    %v45 = vld [vmem:[%s0 + $0x88] sm:$0xff]
    %v46 = vld [vmem:[%s0 + $0x90] sm:$0xff]
    %v47 = vld [vmem:[%s0 + $0x98] sm:$0xff]
    %v48 = vld [vmem:[%s0 + $0xa0] sm:$0xff]
    %v49 = vld [vmem:[%s0 + $0xa8] sm:$0xff]
    %v50 = vld [vmem:[%s0 + $0xb0] sm:$0xff]
    %v51 = vld [vmem:[%s0 + $0xb8] sm:$0xff]
    %v52 = vld [vmem:[%s0 + $0xc0] sm:$0xff]
    %v53 = vld [vmem:[%s0 + $0xc8] sm:$0xff]
    %v54 = vld [vmem:[%s0 + $0xd0] sm:$0xff]
    %v55 = vld [vmem:[%s0 + $0xd8] sm:$0xff]
    %v56 = vld [vmem:[%s0 + $0xe0] sm:$0xff]
    %v57 = vld [vmem:[%s0 + $0xe8] sm:$0xff]
    %v58 = vld [vmem:[%s0 + $0xf0] sm:$0xff]
    %v59 = vld [vmem:[%s0 + $0xf8] sm:$0xff]
    %v60 = vld [vmem:[%s1] sm:$0xff]
    %v61 = vld [vmem:[%s1 + $0x8] sm:$0xff]
    %v62 = vld [vmem:[%s1 + $0x10] sm:$0xff]
    %v63 = vld [vmem:[%s1 + $0x18] sm:$0xff]
    %v64 = vld [vmem:[%s2] sm:$0x1]
    %v66 = vlaneseq
    %v67 = vshrl.u32 %v66, 7
    %v68 = vsub.s32 0, %v67
    %v69 = vrot.slane %v64, %v68
    %vm71 = vcmask 261120
    %v73 = vsel %vm71, %v28, 0
    %v76 = vsel %vm71, %v29, 0
    %v79 = vsel %vm71, %v30, 0
    %v82 = vsel %vm71, %v31, 0
    %v85 = vsel %vm71, %v32, 0
    %v88 = vsel %vm71, %v33, 0
    %v91 = vsel %vm71, %v34, 0
    %v94 = vsel %vm71, %v35, 0
    %v97 = vsel %vm71, %v36, 0
    %v100 = vsel %vm71, %v37, 0
    %v103 = vsel %vm71, %v38, 0
    %v106 = vsel %vm71, %v39, 0
    %v109 = vsel %vm71, %v40, 0
    %v112 = vsel %vm71, %v41, 0
    %v115 = vsel %vm71, %v42, 0
    %v118 = vsel %vm71, %v43, 0
    %v121 = vsel %vm71, %v44, 0
    %v124 = vsel %vm71, %v45, 0
    %v127 = vsel %vm71, %v46, 0
    %v130 = vsel %vm71, %v47, 0
    %v133 = vsel %vm71, %v48, 0
    %v136 = vsel %vm71, %v49, 0
    %v139 = vsel %vm71, %v50, 0
    %v142 = vsel %vm71, %v51, 0
    %v145 = vsel %vm71, %v52, 0
    %v148 = vsel %vm71, %v53, 0
    %v151 = vsel %vm71, %v54, 0
    %v154 = vsel %vm71, %v55, 0
    %v157 = vsel %vm71, %v56, 0
    %v160 = vsel %vm71, %v57, 0
    %v163 = vsel %vm71, %v58, 0
    %v166 = vsel %vm71, %v59, 0
    %168 = vmatprep.subr.mxu0 0.0
    %169 = vmatpush1.msra.mxu0 %v60
    %170 = vmatprep.subr.mxu0 0.0
    %171 = vmatpush1.msra.mxu0 %v61
    %172 = vmatprep.subr.mxu0 0.0
    %173 = vmatpush1.msra.mxu0 %v62
    %174 = vmatprep.subr.mxu0 0.0
    %175 = vmatpush1.msra.mxu0 %v63
    %176 = vmatprep.subr.mxu0 0.0
    %177 = vmatpush1.msra.mxu0 0.0
    %178 = vmatprep.subr.mxu0 0.0
    %179 = vmatpush1.msra.mxu0 0.0
    %180 = vmatprep.subr.mxu0 0.0
    %181 = vmatpush1.msra.mxu0 0.0
    %182 = vmatprep.subr.mxu0 0.0
    %183 = vmatpush1.msra.mxu0 0.0
    %184 = vmatprep.subr.mxu0 0.0
    %185 = vmatpush1.msra.mxu0 0.0
    %186 = vmatprep.subr.mxu0 0.0
    %187 = vmatpush1.msra.mxu0 0.0
    %188 = vmatprep.subr.mxu0 0.0
    %189 = vmatpush1.msra.mxu0 0.0
    %190 = vmatprep.subr.mxu0 0.0
    %191 = vmatpush1.msra.mxu0 0.0
    %192 = vmatprep.subr.mxu0 0.0
    %193 = vmatpush1.msra.mxu0 0.0
    %194 = vmatprep.subr.mxu0 0.0
    %195 = vmatpush1.msra.mxu0 0.0
    %196 = vmatprep.subr.mxu0 0.0
    %197 = vmatpush1.msra.mxu0 0.0
    %198 = vmatprep.subr.mxu0 0.0
    %199 = vmatpush1.msra.mxu0 0.0
    %200 = vmatprep.subr.mxu0 0.0
    %201 = vmatpush1.msra.mxu0 0.0
    %202 = vmatprep.subr.mxu0 0.0
    %203 = vmatpush1.msra.mxu0 0.0
    %204 = vmatprep.subr.mxu0 0.0
    %205 = vmatpush1.msra.mxu0 0.0
    %206 = vmatprep.subr.mxu0 0.0
    %207 = vmatpush1.msra.mxu0 0.0
    %208 = vmatprep.subr.mxu0 0.0
    %209 = vmatpush1.msra.mxu0 0.0
    %210 = vmatprep.subr.mxu0 0.0
    %211 = vmatpush1.msra.mxu0 0.0
    %212 = vmatprep.subr.mxu0 0.0
    %213 = vmatpush1.msra.mxu0 0.0
    %214 = vmatprep.subr.mxu0 0.0
    %215 = vmatpush1.msra.mxu0 0.0
    %216 = vmatprep.subr.mxu0 0.0
    %217 = vmatpush1.msra.mxu0 0.0
    %218 = vmatprep.subr.mxu0 0.0
    %219 = vmatpush1.msra.mxu0 0.0
    %220 = vmatprep.subr.mxu0 0.0
    %221 = vmatpush1.msra.mxu0 0.0
    %222 = vmatprep.subr.mxu0 0.0
    %223 = vmatpush1.msra.mxu0 0.0
    %224 = vmatprep.subr.mxu0 0.0
    %225 = vmatpush1.msra.mxu0 0.0
    %226 = vmatprep.subr.mxu0 0.0
    %227 = vmatpush1.msra.mxu0 0.0
    %228 = vmatprep.subr.mxu0 0.0
    %229 = vmatpush1.msra.mxu0 0.0
    %230 = vmatprep.subr.mxu0 0.0
    %231 = vmatpush1.msra.mxu0 0.0
    %232 = vmatprep.mubr.f32.mxu0 0.0
    %233 = vmatmul.mubr.f32.gmra.mrb[0].mxu0 %v73
    %v234 = vpop.f32.mrb[0].mxu0
    %v235 = vadd.f32 %v69, %v234
    %v236 = vpop.f32.mrb[0].mxu0
    %237 = vmatprep.mubr.f32.mxu0 0.0
    %238 = vmatmul.mubr.f32.gmra.mrb[0].mxu0 %v76
    %v239 = vpop.f32.mrb[0].mxu0
    %v240 = vadd.f32 %v69, %v239
    %v241 = vpop.f32.mrb[0].mxu0
    %242 = vmatprep.mubr.f32.mxu0 0.0
    %243 = vmatmul.mubr.f32.gmra.mrb[0].mxu0 %v79
    %v244 = vpop.f32.mrb[0].mxu0
    %v245 = vadd.f32 %v69, %v244
    %v246 = vpop.f32.mrb[0].mxu0
    %247 = vmatprep.mubr.f32.mxu0 0.0
    %248 = vmatmul.mubr.f32.gmra.mrb[0].mxu0 %v82
    %v249 = vpop.f32.mrb[0].mxu0
    %v250 = vadd.f32 %v69, %v249
    %v251 = vpop.f32.mrb[0].mxu0
    %252 = vmatprep.mubr.f32.mxu0 0.0
    %253 = vmatmul.mubr.f32.gmra.mrb[0].mxu0 %v85
    %v254 = vpop.f32.mrb[0].mxu0
    %v255 = vadd.f32 %v69, %v254
    %v256 = vpop.f32.mrb[0].mxu0
    %257 = vmatprep.mubr.f32.mxu0 0.0
    %258 = vmatmul.mubr.f32.gmra.mrb[0].mxu0 %v88
    %v259 = vpop.f32.mrb[0].mxu0
    %v260 = vadd.f32 %v69, %v259
    %v261 = vpop.f32.mrb[0].mxu0
    %262 = vmatprep.mubr.f32.mxu0 0.0
    %263 = vmatmul.mubr.f32.gmra.mrb[0].mxu0 %v91
    %v264 = vpop.f32.mrb[0].mxu0
    %v265 = vadd.f32 %v69, %v264
    %v266 = vpop.f32.mrb[0].mxu0
    %267 = vmatprep.mubr.f32.mxu0 0.0
    %268 = vmatmul.mubr.f32.gmra.mrb[0].mxu0 %v94
    %v269 = vpop.f32.mrb[0].mxu0
    %v270 = vadd.f32 %v69, %v269
    %v271 = vpop.f32.mrb[0].mxu0
    %272 = vmatprep.mubr.f32.mxu0 0.0
    %273 = vmatmul.mubr.f32.gmra.mrb[0].mxu0 %v97
    %v274 = vpop.f32.mrb[0].mxu0
    %v275 = vadd.f32 %v69, %v274
    %v276 = vpop.f32.mrb[0].mxu0
    %277 = vmatprep.mubr.f32.mxu0 0.0
    %278 = vmatmul.mubr.f32.gmra.mrb[0].mxu0 %v100
    %v279 = vpop.f32.mrb[0].mxu0
    %v280 = vadd.f32 %v69, %v279
    %v281 = vpop.f32.mrb[0].mxu0
    %282 = vmatprep.mubr.f32.mxu0 0.0
    %283 = vmatmul.mubr.f32.gmra.mrb[0].mxu0 %v103
    %v284 = vpop.f32.mrb[0].mxu0
    %v285 = vadd.f32 %v69, %v284
    %v286 = vpop.f32.mrb[0].mxu0
    %287 = vmatprep.mubr.f32.mxu0 0.0
    %288 = vmatmul.mubr.f32.gmra.mrb[0].mxu0 %v106
    %v289 = vpop.f32.mrb[0].mxu0
    %v290 = vadd.f32 %v69, %v289
    %v291 = vpop.f32.mrb[0].mxu0
    %292 = vmatprep.mubr.f32.mxu0 0.0
    %293 = vmatmul.mubr.f32.gmra.mrb[0].mxu0 %v109
    %v294 = vpop.f32.mrb[0].mxu0
    %v295 = vadd.f32 %v69, %v294
    %v296 = vpop.f32.mrb[0].mxu0
    %297 = vmatprep.mubr.f32.mxu0 0.0
    %298 = vmatmul.mubr.f32.gmra.mrb[0].mxu0 %v112
    %v299 = vpop.f32.mrb[0].mxu0
    %v300 = vadd.f32 %v69, %v299
    %v301 = vpop.f32.mrb[0].mxu0
    %302 = vmatprep.mubr.f32.mxu0 0.0
    %303 = vmatmul.mubr.f32.gmra.mrb[0].mxu0 %v115
    %v304 = vpop.f32.mrb[0].mxu0
    %v305 = vadd.f32 %v69, %v304
    %v306 = vpop.f32.mrb[0].mxu0
    %307 = vmatprep.mubr.f32.mxu0 0.0
    %308 = vmatmul.mubr.f32.gmra.mrb[0].mxu0 %v118
    %v309 = vpop.f32.mrb[0].mxu0
    %v310 = vadd.f32 %v69, %v309
    %v311 = vpop.f32.mrb[0].mxu0
    %312 = vmatprep.mubr.f32.mxu0 0.0
    %313 = vmatmul.mubr.f32.gmra.mrb[0].mxu0 %v121
    %v314 = vpop.f32.mrb[0].mxu0
    %v315 = vadd.f32 %v69, %v314
    %v316 = vpop.f32.mrb[0].mxu0
    %317 = vmatprep.mubr.f32.mxu0 0.0
    %318 = vmatmul.mubr.f32.gmra.mrb[0].mxu0 %v124
    %v319 = vpop.f32.mrb[0].mxu0
    %v320 = vadd.f32 %v69, %v319
    %v321 = vpop.f32.mrb[0].mxu0
    %322 = vmatprep.mubr.f32.mxu0 0.0
    %323 = vmatmul.mubr.f32.gmra.mrb[0].mxu0 %v127
    %v324 = vpop.f32.mrb[0].mxu0
    %v325 = vadd.f32 %v69, %v324
    %v326 = vpop.f32.mrb[0].mxu0
    %327 = vmatprep.mubr.f32.mxu0 0.0
    %328 = vmatmul.mubr.f32.gmra.mrb[0].mxu0 %v130
    %v329 = vpop.f32.mrb[0].mxu0
    %v330 = vadd.f32 %v69, %v329
    %v331 = vpop.f32.mrb[0].mxu0
    %332 = vmatprep.mubr.f32.mxu0 0.0
    %333 = vmatmul.mubr.f32.gmra.mrb[0].mxu0 %v133
    %v334 = vpop.f32.mrb[0].mxu0
    %v335 = vadd.f32 %v69, %v334
    %v336 = vpop.f32.mrb[0].mxu0
    %337 = vmatprep.mubr.f32.mxu0 0.0
    %338 = vmatmul.mubr.f32.gmra.mrb[0].mxu0 %v136
    %v339 = vpop.f32.mrb[0].mxu0
    %v340 = vadd.f32 %v69, %v339
    %v341 = vpop.f32.mrb[0].mxu0
    %342 = vmatprep.mubr.f32.mxu0 0.0
    %343 = vmatmul.mubr.f32.gmra.mrb[0].mxu0 %v139
    %v344 = vpop.f32.mrb[0].mxu0
    %v345 = vadd.f32 %v69, %v344
    %v346 = vpop.f32.mrb[0].mxu0
    %347 = vmatprep.mubr.f32.mxu0 0.0
    %348 = vmatmul.mubr.f32.gmra.mrb[0].mxu0 %v142
    %v349 = vpop.f32.mrb[0].mxu0
    %v350 = vadd.f32 %v69, %v349
    %v351 = vpop.f32.mrb[0].mxu0
    %352 = vmatprep.mubr.f32.mxu0 0.0
    %353 = vmatmul.mubr.f32.gmra.mrb[0].mxu0 %v145
    %v354 = vpop.f32.mrb[0].mxu0
    %v355 = vadd.f32 %v69, %v354
    %v356 = vpop.f32.mrb[0].mxu0
    %357 = vmatprep.mubr.f32.mxu0 0.0
    %358 = vmatmul.mubr.f32.gmra.mrb[0].mxu0 %v148
    %v359 = vpop.f32.mrb[0].mxu0
    %v360 = vadd.f32 %v69, %v359
    %v361 = vpop.f32.mrb[0].mxu0
    %362 = vmatprep.mubr.f32.mxu0 0.0
    %363 = vmatmul.mubr.f32.gmra.mrb[0].mxu0 %v151
    %v364 = vpop.f32.mrb[0].mxu0
    %v365 = vadd.f32 %v69, %v364
    %v366 = vpop.f32.mrb[0].mxu0
    %367 = vmatprep.mubr.f32.mxu0 0.0
    %368 = vmatmul.mubr.f32.gmra.mrb[0].mxu0 %v154
    %v369 = vpop.f32.mrb[0].mxu0
    %v370 = vadd.f32 %v69, %v369
    %v371 = vpop.f32.mrb[0].mxu0
    %372 = vmatprep.mubr.f32.mxu0 0.0
    %373 = vmatmul.mubr.f32.gmra.mrb[0].mxu0 %v157
    %v374 = vpop.f32.mrb[0].mxu0
    %v375 = vadd.f32 %v69, %v374
    %v376 = vpop.f32.mrb[0].mxu0
    %377 = vmatprep.mubr.f32.mxu0 0.0
    %378 = vmatmul.mubr.f32.gmra.mrb[0].mxu0 %v160
    %v379 = vpop.f32.mrb[0].mxu0
    %v380 = vadd.f32 %v69, %v379
    %v381 = vpop.f32.mrb[0].mxu0
    %382 = vmatprep.mubr.f32.mxu0 0.0
    %383 = vmatmul.mubr.f32.gmra.mrb[0].mxu0 %v163
    %v384 = vpop.f32.mrb[0].mxu0
    %v385 = vadd.f32 %v69, %v384
    %v386 = vpop.f32.mrb[0].mxu0
    %387 = vmatprep.mubr.f32.mxu0 0.0
    %388 = vmatmul.mubr.f32.gmra.mrb[0].mxu0 %v166
    %v389 = vpop.f32.mrb[0].mxu0
    %v390 = vadd.f32 %v69, %v389
    %v391 = vpop.f32.mrb[0].mxu0
    %392 = vdwg.mxu0
    %v393 = vmul.f32 %v235, 0.1
    %v394 = vmul.f32 %v240, 0.1
    %v395 = vmul.f32 %v245, 0.1
    %v396 = vmul.f32 %v250, 0.1
    %v397 = vmul.f32 %v255, 0.1
    %v398 = vmul.f32 %v260, 0.1
    %v399 = vmul.f32 %v265, 0.1
    %v400 = vmul.f32 %v270, 0.1
    %v401 = vmul.f32 %v275, 0.1
    %v402 = vmul.f32 %v280, 0.1
    %v403 = vmul.f32 %v285, 0.1
    %v404 = vmul.f32 %v290, 0.1
    %v405 = vmul.f32 %v295, 0.1
    %v406 = vmul.f32 %v300, 0.1
    %v407 = vmul.f32 %v305, 0.1
    %v408 = vmul.f32 %v310, 0.1
    %v409 = vmul.f32 %v315, 0.1
    %v410 = vmul.f32 %v320, 0.1
    %v411 = vmul.f32 %v325, 0.1
    %v412 = vmul.f32 %v330, 0.1
    %v413 = vmul.f32 %v335, 0.1
    %v414 = vmul.f32 %v340, 0.1
    %v415 = vmul.f32 %v345, 0.1
    %v416 = vmul.f32 %v350, 0.1
    %v417 = vmul.f32 %v355, 0.1
    %v418 = vmul.f32 %v360, 0.1
    %v419 = vmul.f32 %v365, 0.1
    %v420 = vmul.f32 %v370, 0.1
    %v421 = vmul.f32 %v375, 0.1
    %v422 = vmul.f32 %v380, 0.1
    %v423 = vmul.f32 %v385, 0.1
    %v424 = vmul.f32 %v390, 0.1
    %v425 = vmax.f32 %v235, %v393
    %v426 = vmax.f32 %v240, %v394
    %v427 = vmax.f32 %v245, %v395
    %v428 = vmax.f32 %v250, %v396
    %v429 = vmax.f32 %v255, %v397
    %v430 = vmax.f32 %v260, %v398
    %v431 = vmax.f32 %v265, %v399
    %v432 = vmax.f32 %v270, %v400
    %v433 = vmax.f32 %v275, %v401
    %v434 = vmax.f32 %v280, %v402
    %v435 = vmax.f32 %v285, %v403
    %v436 = vmax.f32 %v290, %v404
    %v437 = vmax.f32 %v295, %v405
    %v438 = vmax.f32 %v300, %v406
    %v439 = vmax.f32 %v305, %v407
    %v440 = vmax.f32 %v310, %v408
    %v441 = vmax.f32 %v315, %v409
    %v442 = vmax.f32 %v320, %v410
    %v443 = vmax.f32 %v325, %v411
    %v444 = vmax.f32 %v330, %v412
    %v445 = vmax.f32 %v335, %v413
    %v446 = vmax.f32 %v340, %v414
    %v447 = vmax.f32 %v345, %v415
    %v448 = vmax.f32 %v350, %v416
    %v449 = vmax.f32 %v355, %v417
    %v450 = vmax.f32 %v360, %v418
    %v451 = vmax.f32 %v365, %v419
    %v452 = vmax.f32 %v370, %v420
    %v453 = vmax.f32 %v375, %v421
    %v454 = vmax.f32 %v380, %v422
    %v455 = vmax.f32 %v385, %v423
    %v456 = vmax.f32 %v390, %v424
    %v457 = vld [vmem:[%s3] sm:$0xff]
    %v458 = vld [vmem:[%s3 + $0x8] sm:$0xff]
    %v459 = vld [vmem:[%s3 + $0x10] sm:$0xff]
    %v460 = vld [vmem:[%s3 + $0x18] sm:$0xff]
    %v461 = vld [vmem:[%s3 + $0x20] sm:$0xff]
    %v462 = vld [vmem:[%s3 + $0x28] sm:$0xff]
    %v463 = vld [vmem:[%s3 + $0x30] sm:$0xff]
    %v464 = vld [vmem:[%s3 + $0x38] sm:$0xff]
    %v465 = vld [vmem:[%s3 + $0x40] sm:$0xff]
    %v466 = vld [vmem:[%s3 + $0x48] sm:$0xff]
    %v467 = vld [vmem:[%s3 + $0x50] sm:$0xff]
    %v468 = vld [vmem:[%s3 + $0x58] sm:$0xff]
    %v469 = vld [vmem:[%s3 + $0x60] sm:$0xff]
    %v470 = vld [vmem:[%s3 + $0x68] sm:$0xff]
    %v471 = vld [vmem:[%s3 + $0x70] sm:$0xff]
    %v472 = vld [vmem:[%s3 + $0x78] sm:$0xff]
    %v473 = vld [vmem:[%s4] sm:$0x1]
    %v475 = vlaneseq
    %v476 = vshrl.u32 %v475, 7
    %v477 = vsub.s32 0, %v476
    %v478 = vrot.slane %v473, %v477
    %480 = vmatprep.subr.mxu0 0.0
    %481 = vmatpush1.msra.mxu0 %v457
    %482 = vmatprep.subr.mxu0 0.0
    %483 = vmatpush1.msra.mxu0 %v458
    %484 = vmatprep.subr.mxu0 0.0
    %485 = vmatpush1.msra.mxu0 %v459
    %486 = vmatprep.subr.mxu0 0.0
    %487 = vmatpush1.msra.mxu0 %v460
    %488 = vmatprep.subr.mxu0 0.0
    %489 = vmatpush1.msra.mxu0 %v461
    %490 = vmatprep.subr.mxu0 0.0
    %491 = vmatpush1.msra.mxu0 %v462
    %492 = vmatprep.subr.mxu0 0.0
    %493 = vmatpush1.msra.mxu0 %v463
    %494 = vmatprep.subr.mxu0 0.0
    %495 = vmatpush1.msra.mxu0 %v464
    %496 = vmatprep.subr.mxu0 0.0
    %497 = vmatpush1.msra.mxu0 %v465
    %498 = vmatprep.subr.mxu0 0.0
    %499 = vmatpush1.msra.mxu0 %v466
    %500 = vmatprep.subr.mxu0 0.0
    %501 = vmatpush1.msra.mxu0 %v467
    %502 = vmatprep.subr.mxu0 0.0
    %503 = vmatpush1.msra.mxu0 %v468
    %504 = vmatprep.subr.mxu0 0.0
    %505 = vmatpush1.msra.mxu0 %v469
    %506 = vmatprep.subr.mxu0 0.0
    %507 = vmatpush1.msra.mxu0 %v470
    %508 = vmatprep.subr.mxu0 0.0
    %509 = vmatpush1.msra.mxu0 %v471
    %510 = vmatprep.subr.mxu0 0.0
    %511 = vmatpush1.msra.mxu0 %v472
    %512 = vmatprep.subr.mxu0 0.0
    %513 = vmatpush1.msra.mxu0 0.0
    %514 = vmatprep.subr.mxu0 0.0
    %515 = vmatpush1.msra.mxu0 0.0
    %516 = vmatprep.subr.mxu0 0.0
    %517 = vmatpush1.msra.mxu0 0.0
    %518 = vmatprep.subr.mxu0 0.0
    %519 = vmatpush1.msra.mxu0 0.0
    %520 = vmatprep.subr.mxu0 0.0
    %521 = vmatpush1.msra.mxu0 0.0
    %522 = vmatprep.subr.mxu0 0.0
    %523 = vmatpush1.msra.mxu0 0.0
    %524 = vmatprep.subr.mxu0 0.0
    %525 = vmatpush1.msra.mxu0 0.0
    %526 = vmatprep.subr.mxu0 0.0
    %527 = vmatpush1.msra.mxu0 0.0
    %528 = vmatprep.subr.mxu0 0.0
    %529 = vmatpush1.msra.mxu0 0.0
    %530 = vmatprep.subr.mxu0 0.0
    %531 = vmatpush1.msra.mxu0 0.0
    %532 = vmatprep.subr.mxu0 0.0
    %533 = vmatpush1.msra.mxu0 0.0
    %534 = vmatprep.subr.mxu0 0.0
    %535 = vmatpush1.msra.mxu0 0.0
    %536 = vmatprep.subr.mxu0 0.0
    %537 = vmatpush1.msra.mxu0 0.0
    %538 = vmatprep.subr.mxu0 0.0
    %539 = vmatpush1.msra.mxu0 0.0
    %540 = vmatprep.subr.mxu0 0.0
    %541 = vmatpush1.msra.mxu0 0.0
    %542 = vmatprep.subr.mxu0 0.0
    %543 = vmatpush1.msra.mxu0 0.0
    %544 = vmatprep.mubr.f32.mxu0 0.0
    %545 = vmatmul.mubr.f32.gmra.mrb[0].mxu0 %v425
    %v546 = vpop.f32.mrb[0].mxu0
    %v547 = vadd.f32 %v478, %v546
    %v548 = vpop.f32.mrb[0].mxu0
    %549 = vmatprep.mubr.f32.mxu0 0.0
    %550 = vmatmul.mubr.f32.gmra.mrb[0].mxu0 %v426
    %v551 = vpop.f32.mrb[0].mxu0
    %v552 = vadd.f32 %v478, %v551
    %v553 = vpop.f32.mrb[0].mxu0
    %554 = vmatprep.mubr.f32.mxu0 0.0
    %555 = vmatmul.mubr.f32.gmra.mrb[0].mxu0 %v427
    %v556 = vpop.f32.mrb[0].mxu0
    %v557 = vadd.f32 %v478, %v556
    %v558 = vpop.f32.mrb[0].mxu0
    %559 = vmatprep.mubr.f32.mxu0 0.0
    %560 = vmatmul.mubr.f32.gmra.mrb[0].mxu0 %v428
    %v561 = vpop.f32.mrb[0].mxu0
    %v562 = vadd.f32 %v478, %v561
    %v563 = vpop.f32.mrb[0].mxu0
    %564 = vmatprep.mubr.f32.mxu0 0.0
    %565 = vmatmul.mubr.f32.gmra.mrb[0].mxu0 %v429
    %v566 = vpop.f32.mrb[0].mxu0
    %v567 = vadd.f32 %v478, %v566
    %v568 = vpop.f32.mrb[0].mxu0
    %569 = vmatprep.mubr.f32.mxu0 0.0
    %570 = vmatmul.mubr.f32.gmra.mrb[0].mxu0 %v430
    %v571 = vpop.f32.mrb[0].mxu0
    %v572 = vadd.f32 %v478, %v571
    %v573 = vpop.f32.mrb[0].mxu0
    %574 = vmatprep.mubr.f32.mxu0 0.0
    %575 = vmatmul.mubr.f32.gmra.mrb[0].mxu0 %v431
    %v576 = vpop.f32.mrb[0].mxu0
    %v577 = vadd.f32 %v478, %v576
    %v578 = vpop.f32.mrb[0].mxu0
    %579 = vmatprep.mubr.f32.mxu0 0.0
    %580 = vmatmul.mubr.f32.gmra.mrb[0].mxu0 %v432
    %v581 = vpop.f32.mrb[0].mxu0
    %v582 = vadd.f32 %v478, %v581
    %v583 = vpop.f32.mrb[0].mxu0
    %584 = vmatprep.mubr.f32.mxu0 0.0
    %585 = vmatmul.mubr.f32.gmra.mrb[0].mxu0 %v433
    %v586 = vpop.f32.mrb[0].mxu0
    %v587 = vadd.f32 %v478, %v586
    %v588 = vpop.f32.mrb[0].mxu0
    %589 = vmatprep.mubr.f32.mxu0 0.0
    %590 = vmatmul.mubr.f32.gmra.mrb[0].mxu0 %v434
    %v591 = vpop.f32.mrb[0].mxu0
    %v592 = vadd.f32 %v478, %v591
    %v593 = vpop.f32.mrb[0].mxu0
    %594 = vmatprep.mubr.f32.mxu0 0.0
    %595 = vmatmul.mubr.f32.gmra.mrb[0].mxu0 %v435
    %v596 = vpop.f32.mrb[0].mxu0
    %v597 = vadd.f32 %v478, %v596
    %v598 = vpop.f32.mrb[0].mxu0
    %599 = vmatprep.mubr.f32.mxu0 0.0
    %600 = vmatmul.mubr.f32.gmra.mrb[0].mxu0 %v436
    %v601 = vpop.f32.mrb[0].mxu0
    %v602 = vadd.f32 %v478, %v601
    %v603 = vpop.f32.mrb[0].mxu0
    %604 = vmatprep.mubr.f32.mxu0 0.0
    %605 = vmatmul.mubr.f32.gmra.mrb[0].mxu0 %v437
    %v606 = vpop.f32.mrb[0].mxu0
    %v607 = vadd.f32 %v478, %v606
    %v608 = vpop.f32.mrb[0].mxu0
    %609 = vmatprep.mubr.f32.mxu0 0.0
    %610 = vmatmul.mubr.f32.gmra.mrb[0].mxu0 %v438
    %v611 = vpop.f32.mrb[0].mxu0
    %v612 = vadd.f32 %v478, %v611
    %v613 = vpop.f32.mrb[0].mxu0
    %614 = vmatprep.mubr.f32.mxu0 0.0
    %615 = vmatmul.mubr.f32.gmra.mrb[0].mxu0 %v439
    %v616 = vpop.f32.mrb[0].mxu0
    %v617 = vadd.f32 %v478, %v616
    %v618 = vpop.f32.mrb[0].mxu0
    %619 = vmatprep.mubr.f32.mxu0 0.0
    %620 = vmatmul.mubr.f32.gmra.mrb[0].mxu0 %v440
    %v621 = vpop.f32.mrb[0].mxu0
    %v622 = vadd.f32 %v478, %v621
    %v623 = vpop.f32.mrb[0].mxu0
    %624 = vmatprep.mubr.f32.mxu0 0.0
    %625 = vmatmul.mubr.f32.gmra.mrb[0].mxu0 %v441
    %v626 = vpop.f32.mrb[0].mxu0
    %v627 = vadd.f32 %v478, %v626
    %v628 = vpop.f32.mrb[0].mxu0
    %629 = vmatprep.mubr.f32.mxu0 0.0
    %630 = vmatmul.mubr.f32.gmra.mrb[0].mxu0 %v442
    %v631 = vpop.f32.mrb[0].mxu0
    %v632 = vadd.f32 %v478, %v631
    %v633 = vpop.f32.mrb[0].mxu0
    %634 = vmatprep.mubr.f32.mxu0 0.0
    %635 = vmatmul.mubr.f32.gmra.mrb[0].mxu0 %v443
    %v636 = vpop.f32.mrb[0].mxu0
    %v637 = vadd.f32 %v478, %v636
    %v638 = vpop.f32.mrb[0].mxu0
    %639 = vmatprep.mubr.f32.mxu0 0.0
    %640 = vmatmul.mubr.f32.gmra.mrb[0].mxu0 %v444
    %v641 = vpop.f32.mrb[0].mxu0
    %v642 = vadd.f32 %v478, %v641
    %v643 = vpop.f32.mrb[0].mxu0
    %644 = vmatprep.mubr.f32.mxu0 0.0
    %645 = vmatmul.mubr.f32.gmra.mrb[0].mxu0 %v445
    %v646 = vpop.f32.mrb[0].mxu0
    %v647 = vadd.f32 %v478, %v646
    %v648 = vpop.f32.mrb[0].mxu0
    %649 = vmatprep.mubr.f32.mxu0 0.0
    %650 = vmatmul.mubr.f32.gmra.mrb[0].mxu0 %v446
    %v651 = vpop.f32.mrb[0].mxu0
    %v652 = vadd.f32 %v478, %v651
    %v653 = vpop.f32.mrb[0].mxu0
    %654 = vmatprep.mubr.f32.mxu0 0.0
    %655 = vmatmul.mubr.f32.gmra.mrb[0].mxu0 %v447
    %v656 = vpop.f32.mrb[0].mxu0
    %v657 = vadd.f32 %v478, %v656
    %v658 = vpop.f32.mrb[0].mxu0
    %659 = vmatprep.mubr.f32.mxu0 0.0
    %660 = vmatmul.mubr.f32.gmra.mrb[0].mxu0 %v448
    %v661 = vpop.f32.mrb[0].mxu0
    %v662 = vadd.f32 %v478, %v661
    %v663 = vpop.f32.mrb[0].mxu0
    %664 = vmatprep.mubr.f32.mxu0 0.0
    %665 = vmatmul.mubr.f32.gmra.mrb[0].mxu0 %v449
    %v666 = vpop.f32.mrb[0].mxu0
    %v667 = vadd.f32 %v478, %v666
    %v668 = vpop.f32.mrb[0].mxu0
    %669 = vmatprep.mubr.f32.mxu0 0.0
    %670 = vmatmul.mubr.f32.gmra.mrb[0].mxu0 %v450
    %v671 = vpop.f32.mrb[0].mxu0
    %v672 = vadd.f32 %v478, %v671
    %v673 = vpop.f32.mrb[0].mxu0
    %674 = vmatprep.mubr.f32.mxu0 0.0
    %675 = vmatmul.mubr.f32.gmra.mrb[0].mxu0 %v451
    %v676 = vpop.f32.mrb[0].mxu0
    %v677 = vadd.f32 %v478, %v676
    %v678 = vpop.f32.mrb[0].mxu0
    %679 = vmatprep.mubr.f32.mxu0 0.0
    %680 = vmatmul.mubr.f32.gmra.mrb[0].mxu0 %v452
    %v681 = vpop.f32.mrb[0].mxu0
    %v682 = vadd.f32 %v478, %v681
    %v683 = vpop.f32.mrb[0].mxu0
    %684 = vmatprep.mubr.f32.mxu0 0.0
    %685 = vmatmul.mubr.f32.gmra.mrb[0].mxu0 %v453
    %v686 = vpop.f32.mrb[0].mxu0
    %v687 = vadd.f32 %v478, %v686
    %v688 = vpop.f32.mrb[0].mxu0
    %689 = vmatprep.mubr.f32.mxu0 0.0
    %690 = vmatmul.mubr.f32.gmra.mrb[0].mxu0 %v454
    %v691 = vpop.f32.mrb[0].mxu0
    %v692 = vadd.f32 %v478, %v691
    %v693 = vpop.f32.mrb[0].mxu0
    %694 = vmatprep.mubr.f32.mxu0 0.0
    %695 = vmatmul.mubr.f32.gmra.mrb[0].mxu0 %v455
    %v696 = vpop.f32.mrb[0].mxu0
    %v697 = vadd.f32 %v478, %v696
    %v698 = vpop.f32.mrb[0].mxu0
    %699 = vmatprep.mubr.f32.mxu0 0.0
    %700 = vmatmul.mubr.f32.gmra.mrb[0].mxu0 %v456
    %v701 = vpop.f32.mrb[0].mxu0
    %v702 = vadd.f32 %v478, %v701
    %v703 = vpop.f32.mrb[0].mxu0
    %704 = vdwg.mxu0
    %v705 = vmul.f32 %v547, 0.1
    %v706 = vmul.f32 %v552, 0.1
    %v707 = vmul.f32 %v557, 0.1
    %v708 = vmul.f32 %v562, 0.1
    %v709 = vmul.f32 %v567, 0.1
    %v710 = vmul.f32 %v572, 0.1
    %v711 = vmul.f32 %v577, 0.1
    %v712 = vmul.f32 %v582, 0.1
    %v713 = vmul.f32 %v587, 0.1
    %v714 = vmul.f32 %v592, 0.1
    %v715 = vmul.f32 %v597, 0.1
    %v716 = vmul.f32 %v602, 0.1
    %v717 = vmul.f32 %v607, 0.1
    %v718 = vmul.f32 %v612, 0.1
    %v719 = vmul.f32 %v617, 0.1
    %v720 = vmul.f32 %v622, 0.1
    %v721 = vmul.f32 %v627, 0.1
    %v722 = vmul.f32 %v632, 0.1
    %v723 = vmul.f32 %v637, 0.1
    %v724 = vmul.f32 %v642, 0.1
    %v725 = vmul.f32 %v647, 0.1
    %v726 = vmul.f32 %v652, 0.1
    %v727 = vmul.f32 %v657, 0.1
    %v728 = vmul.f32 %v662, 0.1
    %v729 = vmul.f32 %v667, 0.1
    %v730 = vmul.f32 %v672, 0.1
    %v731 = vmul.f32 %v677, 0.1
    %v732 = vmul.f32 %v682, 0.1
    %v733 = vmul.f32 %v687, 0.1
    %v734 = vmul.f32 %v692, 0.1
    %v735 = vmul.f32 %v697, 0.1
    %v736 = vmul.f32 %v702, 0.1
    %v737 = vmax.f32 %v547, %v705
    %v738 = vmax.f32 %v552, %v706
    %v739 = vmax.f32 %v557, %v707
    %v740 = vmax.f32 %v562, %v708
    %v741 = vmax.f32 %v567, %v709
    %v742 = vmax.f32 %v572, %v710
    %v743 = vmax.f32 %v577, %v711
    %v744 = vmax.f32 %v582, %v712
    %v745 = vmax.f32 %v587, %v713
    %v746 = vmax.f32 %v592, %v714
    %v747 = vmax.f32 %v597, %v715
    %v748 = vmax.f32 %v602, %v716
    %v749 = vmax.f32 %v607, %v717
    %v750 = vmax.f32 %v612, %v718
    %v751 = vmax.f32 %v617, %v719
    %v752 = vmax.f32 %v622, %v720
    %v753 = vmax.f32 %v627, %v721
    %v754 = vmax.f32 %v632, %v722
    %v755 = vmax.f32 %v637, %v723
    %v756 = vmax.f32 %v642, %v724
    %v757 = vmax.f32 %v647, %v725
    %v758 = vmax.f32 %v652, %v726
    %v759 = vmax.f32 %v657, %v727
    %v760 = vmax.f32 %v662, %v728
    %v761 = vmax.f32 %v667, %v729
    %v762 = vmax.f32 %v672, %v730
    %v763 = vmax.f32 %v677, %v731
    %v764 = vmax.f32 %v682, %v732
    %v765 = vmax.f32 %v687, %v733
    %v766 = vmax.f32 %v692, %v734
    %v767 = vmax.f32 %v697, %v735
    %v768 = vmax.f32 %v702, %v736
    %v769 = vld [vmem:[%s5] sm:$0x1]
    %s770 = sld [smem:[#allocation2]]
    %v771 = vstv %s770
    %772 = vmatprep.subr.mxu0 0.0
    %773 = vmatpush1.xpose.msra.mxu0 %v737
    %774 = vmatprep.subr.mxu0 0.0
    %775 = vmatpush1.xpose.msra.mxu0 %v738
    %776 = vmatprep.subr.mxu0 0.0
    %777 = vmatpush1.xpose.msra.mxu0 %v739
    %778 = vmatprep.subr.mxu0 0.0
    %779 = vmatpush1.xpose.msra.mxu0 %v740
    %780 = vmatprep.subr.mxu0 0.0
    %781 = vmatpush1.xpose.msra.mxu0 %v741
    %782 = vmatprep.subr.mxu0 0.0
    %783 = vmatpush1.xpose.msra.mxu0 %v742
    %784 = vmatprep.subr.mxu0 0.0
    %785 = vmatpush1.xpose.msra.mxu0 %v743
    %786 = vmatprep.subr.mxu0 0.0
    %787 = vmatpush1.xpose.msra.mxu0 %v744
    %788 = vmatprep.subr.mxu0 0.0
    %789 = vmatpush1.xpose.msra.mxu0 %v745
    %790 = vmatprep.subr.mxu0 0.0
    %791 = vmatpush1.xpose.msra.mxu0 %v746
    %792 = vmatprep.subr.mxu0 0.0
    %793 = vmatpush1.xpose.msra.mxu0 %v747
    %794 = vmatprep.subr.mxu0 0.0
    %795 = vmatpush1.xpose.msra.mxu0 %v748
    %796 = vmatprep.subr.mxu0 0.0
    %797 = vmatpush1.xpose.msra.mxu0 %v749
    %798 = vmatprep.subr.mxu0 0.0
    %799 = vmatpush1.xpose.msra.mxu0 %v750
    %800 = vmatprep.subr.mxu0 0.0
    %801 = vmatpush1.xpose.msra.mxu0 %v751
    %802 = vmatprep.subr.mxu0 0.0
    %803 = vmatpush1.xpose.msra.mxu0 %v752
    %804 = vmatprep.subr.mxu0 0.0
    %805 = vmatpush1.xpose.msra.mxu0 %v753
    %806 = vmatprep.subr.mxu0 0.0
    %807 = vmatpush1.xpose.msra.mxu0 %v754
    %808 = vmatprep.subr.mxu0 0.0
    %809 = vmatpush1.xpose.msra.mxu0 %v755
    %810 = vmatprep.subr.mxu0 0.0
    %811 = vmatpush1.xpose.msra.mxu0 %v756
    %812 = vmatprep.subr.mxu0 0.0
    %813 = vmatpush1.xpose.msra.mxu0 %v757
    %814 = vmatprep.subr.mxu0 0.0
    %815 = vmatpush1.xpose.msra.mxu0 %v758
    %816 = vmatprep.subr.mxu0 0.0
    %817 = vmatpush1.xpose.msra.mxu0 %v759
    %818 = vmatprep.subr.mxu0 0.0
    %819 = vmatpush1.xpose.msra.mxu0 %v760
    %820 = vmatprep.subr.mxu0 0.0
    %821 = vmatpush1.xpose.msra.mxu0 %v761
    %822 = vmatprep.subr.mxu0 0.0
    %823 = vmatpush1.xpose.msra.mxu0 %v762
    %824 = vmatprep.subr.mxu0 0.0
    %825 = vmatpush1.xpose.msra.mxu0 %v763
    %826 = vmatprep.subr.mxu0 0.0
    %827 = vmatpush1.xpose.msra.mxu0 %v764
    %828 = vmatprep.subr.mxu0 0.0
    %829 = vmatpush1.xpose.msra.mxu0 %v765
    %830 = vmatprep.subr.mxu0 0.0
    %831 = vmatpush1.xpose.msra.mxu0 %v766
    %832 = vmatprep.subr.mxu0 0.0
    %833 = vmatpush1.xpose.msra.mxu0 %v767
    %834 = vmatprep.subr.mxu0 0.0
    %835 = vmatpush1.xpose.msra.mxu0 %v768
    %836 = vmatprep.mubr.f32.mxu0 0.0
    %837 = vmatmul.mubr.f32.gmra.mrb[0].mxu0 %v769
    %v838 = vpop.f32.mrb[0].mxu0
    %v839 = vadd.f32 %v771, %v838
    %v840 = vpop.f32.mrb[0].mxu0
    %v841 = vadd.f32 %v771, %v840
    %842 = vdwg.mxu0
    %v845 = vcombine.low %v839, %v841
    %v847 = vunpack.c.l.s4 1966171168
    %v848 = vunpack.c.0.s8 %v847
    %v849 = vlaneseq
    %v850 = vshrl.u32 %v849, 7
    %v851 = vsub.s32 %v848, %v850
    %v852 = vrot.slane %v845, %v851
    %v854 = vunpack.c.l.s4 1966171168
    %v855 = vunpack.c.0.s8 %v854
    %v856 = vlaneseq
    %v857 = vshrl.u32 %v856, 7
    %v858 = vsub.s32 %v855, %v857
    %v859 = vrot.slane %v852, %v858
    %v861 = vlaneseq
    %vm862 = vcmp.ge.s32.totalorder %v861, 0
    %vm863 = vcmp.lt.s32.totalorder %v861, 256
    %vm864 = vmand %vm862, %vm863
    %865 = vst.msk [vmem:[#allocation3] sm:$0x3] %vm864, %v859
    // Predicated region
    $region30: #{tpu_custom_call.1} parent=1 // pred_check
      _
    $region31: #{tpu_custom_call.1} parent=1 // pred_check_branch
      %867 = sbr.rel (0) target = $region33
    $region32: #{tpu_custom_call.1} parent=1 // pred_region
      %s869 = ssub.s32 32, 32
      %870 = vsyncadd [#allocation4], %s869
      %s872 = sshll.u32 [#allocation3], 4
      %s873 = int_to_ptr.vmem [resolvable:$true] %s872
      %875 = dma.vmem_to_hbm [thread:$0]  %s873, 32, %s7, [#allocation4]
    $region33: #{tpu_custom_call.1} parent=1 // pred_fallthru
      _
    // Predicated region
    $region34: #{tpu_custom_call.1} parent=1 // pred_check
      _
    $region35: #{tpu_custom_call.1} parent=1 // pred_check_branch
      %877 = sbr.rel (0) target = $region37
    $region36: #{tpu_custom_call.1} parent=1 // pred_region
      %878 = dma.done [#allocation4], 32
    $region37: #{tpu_custom_call.1} parent=1 // pred_fallthru
      _
    %879 = vsyncpa [#allocation4], 1

</llo_original>
